<compile_context>
chip_gen: v7x
topology: tpu7x:2x2x1
jax: 0.10.0
libtpu: 0.0.40
codegen_flags: <defaults>
</compile_context>

<pallas_src>
import functools

import jax
import jax.numpy as jnp
from jax.experimental import pallas as pl
from jax.experimental.pallas import tpu as pltpu


def _round_up(x, m):
    return (x + m - 1) // m * m


def _vae_kernel(max_action, sd_p, ad_p, ld_p, mxu_dtype,
                xin_ref,
                w1_ref, b1_ref, w2_ref, b2_ref, wh_ref, bh_ref,
                wd1s_ref, wd1z_ref, bd1_ref, wd2_ref, bd2_ref,
                wd3_ref, bd3_ref,
                out_ref):
    f32 = jnp.float32

    def mm(w_ref, x):
        # MXU inputs optionally bf16; accumulate in f32.
        return jnp.dot(w_ref[...].astype(mxu_dtype), x.astype(mxu_dtype),
                       preferred_element_type=f32)

    sa_rows = sd_p + ad_p
    sa = xin_ref[0:sa_rows, :]                    # [state ; action] (8-aligned)
    state = xin_ref[0:sd_p, :]                    # state segment    (8-aligned)
    eps = xin_ref[sa_rows:sa_rows + ld_p, :]      # eps segment      (8-aligned)

    # ----- encoder -----
    h = jnp.maximum(mm(w1_ref, sa) + b1_ref[...], 0.0)
    h = jnp.maximum(mm(w2_ref, h) + b2_ref[...], 0.0)

    # fused mean / log_std head: one MXU pass, rows split at an 8-aligned offset
    head = mm(wh_ref, h) + bh_ref[...]
    mean = head[0:ld_p, :]
    log_std = jnp.clip(head[ld_p:2 * ld_p, :], -4.0, 15.0)
    std = jnp.exp(log_std)

    # reparameterize
    z = mean + std * eps

    # ----- decoder -----
    # d1 split into state / z partial dots: no [state; z] scratch round-trip.
    d = mm(wd1s_ref, state) + mm(wd1z_ref, z) + bd1_ref[...]
    d = jnp.maximum(d, 0.0)
    d = jnp.maximum(mm(wd2_ref, d) + bd2_ref[...], 0.0)
    a = mm(wd3_ref, d) + bd3_ref[...]

    # Single packed, lane-dense output slab: [u ; mean ; std]
    out_ref[0:ad_p, :] = max_action * jnp.tanh(a)
    out_ref[ad_p:ad_p + ld_p, :] = mean
    out_ref[ad_p + ld_p:, :] = std


def _pack_params(p, state_dim, action_dim, latent_dim):
    """Pad weights so they match the 8-row-aligned packed input/output slabs."""
    sd_p = _round_up(state_dim, 8)
    ad_p = _round_up(action_dim, 8)
    ld_p = _round_up(latent_dim, 8)
    hidden = p["w1"].shape[0]
    f32 = jnp.float32

    # e1: columns laid out as [state (padded to sd_p) ; action (padded to ad_p)]
    w1_p = jnp.zeros((hidden, sd_p + ad_p), f32)
    w1_p = w1_p.at[:, :state_dim].set(p["w1"][:, :state_dim])
    w1_p = w1_p.at[:, sd_p:sd_p + action_dim].set(p["w1"][:, state_dim:])

    # fused mean / log_std head: rows [0:ld_p) = mean, [ld_p:2*ld_p) = log_std
    wh = jnp.zeros((2 * ld_p, hidden), f32)
    wh = wh.at[:latent_dim].set(p["wm"])
    wh = wh.at[ld_p:ld_p + latent_dim].set(p["wls"])
    bh = jnp.zeros((2 * ld_p, 1), f32)
    bh = bh.at[:latent_dim].set(p["bm"])
    bh = bh.at[ld_p:ld_p + latent_dim].set(p["bls"])

    # d1 split into state / z parts (padded columns are zero)
    wd1s = jnp.zeros((hidden, sd_p), f32)
    wd1s = wd1s.at[:, :state_dim].set(p["wd1"][:, :state_dim])
    wd1z = jnp.zeros((hidden, ld_p), f32)
    wd1z = wd1z.at[:, :latent_dim].set(p["wd1"][:, state_dim:])

    # d3 rows padded to ad_p so u occupies an 8-aligned output segment
    wd3 = jnp.zeros((ad_p, hidden), f32).at[:action_dim].set(p["wd3"])
    bd3 = jnp.zeros((ad_p, 1), f32).at[:action_dim].set(p["bd3"])

    return (w1_p, p["b1"].astype(f32), p["w2"].astype(f32), p["b2"].astype(f32),
            wh, bh, wd1s, wd1z, p["bd1"].astype(f32),
            p["wd2"].astype(f32), p["bd2"].astype(f32), wd3, bd3)


def vae_forward(state, action, eps, params, max_action, *,
                block_b=None, use_bf16_mxu=False):
    """Fused VAE.forward. Inputs/outputs use the PyTorch (B, feat) layout.

    block_b=None (default): whole 128-padded batch in a single grid step
    (best on v5e/v6e). On v7x pass block_b = round_up(ceil(B/2), 128) to get
    exactly 2 'parallel' steps and shard across both TensorCores.
    """
    B, state_dim = state.shape
    action_dim = action.shape[1]
    latent_dim = eps.shape[1]
    sd_p = _round_up(state_dim, 8)
    ad_p = _round_up(action_dim, 8)
    ld_p = _round_up(latent_dim, 8)
    f32 = jnp.float32

    # Batch tile: full-width lanes (multiple of 128), whole batch by default.
    Bp = _round_up(B, 128)
    if block_b is None:
        tb = Bp
    else:
        tb = min(_round_up(block_b, 128), Bp)
    Bp = _round_up(Bp, tb)
    grid = (Bp // tb,)

    # Pack [state ‖ action ‖ eps] into one lane-dense slab with 8-aligned
    # segments; padded rows/lanes are zero (bounded ops only -> no NaN risk).
    def pad_cols(x, target):
        return jnp.pad(x.astype(f32), ((0, 0), (0, target - x.shape[1])))

    packed = jnp.concatenate([pad_cols(state, sd_p),
                              pad_cols(action, ad_p),
                              pad_cols(eps, ld_p)], axis=1)
    xin = jnp.pad(packed, ((0, Bp - B), (0, 0))).T          # (feat, Bp)
    feat = sd_p + ad_p + ld_p
    out_rows = ad_p + 2 * ld_p

    weights = _pack_params(params, state_dim, action_dim, latent_dim)

    mxu_dtype = jnp.bfloat16 if use_bf16_mxu else jnp.float32
    kernel = functools.partial(_vae_kernel, float(max_action),
                               sd_p, ad_p, ld_p, mxu_dtype)

    # Weights/biases: full-array blocks, constant index_map -> VMEM-resident.
    resident = [pl.BlockSpec(w.shape, lambda i: (0, 0)) for w in weights]

    out_t = pl.pallas_call(
        kernel,
        out_shape=jax.ShapeDtypeStruct((out_rows, Bp), f32),
        grid=grid,
        in_specs=[pl.BlockSpec((feat, tb), lambda i: (0, i))] + resident,
        out_specs=pl.BlockSpec((out_rows, tb), lambda i: (0, i)),
        compiler_params=pltpu.CompilerParams(
            dimension_semantics=("parallel",)),   # megacore split when grid>1
    )(xin, *weights)

    # Single wrapper transpose of the packed slab, then cheap row-range slices.
    out = out_t[:, :B].T
    u = out[:, :action_dim]
    mean = out[:, ad_p:ad_p + latent_dim]
    std = out[:, ad_p + ld_p:ad_p + ld_p + latent_dim]
    return u, mean, std


def init_params(key, state_dim, action_dim, latent_dim, hidden_size):
    """Deterministic synthetic parameters in torch layout: W (out, in), b (out, 1)."""
    keys = jax.random.split(key, 7)

    def lin(k, fan_in, fan_out):
        kw, kb = jax.random.split(k)
        scale = 1.0 / jnp.sqrt(jnp.float32(fan_in))
        w = jax.random.uniform(kw, (fan_out, fan_in), jnp.float32, -scale, scale)
        b = jax.random.uniform(kb, (fan_out, 1), jnp.float32, -scale, scale)
        return w, b

    w1, b1 = lin(keys[0], state_dim + action_dim, hidden_size)    # e1
    w2, b2 = lin(keys[1], hidden_size, hidden_size)               # e2
    wm, bm = lin(keys[2], hidden_size, latent_dim)                # mean
    wls, bls = lin(keys[3], hidden_size, latent_dim)              # log_std
    wd1, bd1 = lin(keys[4], state_dim + latent_dim, hidden_size)  # d1
    wd2, bd2 = lin(keys[5], hidden_size, hidden_size)             # d2
    wd3, bd3 = lin(keys[6], hidden_size, action_dim)              # d3

    return {"w1": w1, "b1": b1, "w2": w2, "b2": b2,
            "wm": wm, "bm": bm, "wls": wls, "bls": bls,
            "wd1": wd1, "bd1": bd1, "wd2": wd2, "bd2": bd2,
            "wd3": wd3, "bd3": bd3}


def vae_forward_ref(state, action, eps, p, max_action):
    """Pure-JAX reference for correctness checking."""
    x = jnp.concatenate([state, action], axis=1)
    h = jnp.maximum(x @ p["w1"].T + p["b1"].T, 0.0)
    h = jnp.maximum(h @ p["w2"].T + p["b2"].T, 0.0)
    mean = h @ p["wm"].T + p["bm"].T
    log_std = jnp.clip(h @ p["wls"].T + p["bls"].T, -4.0, 15.0)
    std = jnp.exp(log_std)
    z = mean + std * eps
    sz = jnp.concatenate([state, z], axis=1)
    d = jnp.maximum(sz @ p["wd1"].T + p["bd1"].T, 0.0)
    d = jnp.maximum(d @ p["wd2"].T + p["bd2"].T, 0.0)
    u = max_action * jnp.tanh(d @ p["wd3"].T + p["bd3"].T)
    return u, mean, std


if __name__ == "__main__":
    # Small shapes consistent with the module; state_dim=11 (not a multiple of
    # 8) exercises the sublane-padding path, batch=256 exercises both the
    # single-step and the 2-step (megacore-style) tilings.
    batch = 256
    state_dim = 11
    action_dim = 4
    latent_dim = 2 * action_dim   # BCQ/PLAS convention
    hidden_size = 64
    max_action = 1.0

    root = jax.random.PRNGKey(0)
    k_state, k_action, k_eps, k_params = jax.random.split(root, 4)

    state = jax.random.normal(k_state, (batch, state_dim), jnp.float32)
    action = jax.random.normal(k_action, (batch, action_dim), jnp.float32)
    eps = jax.random.normal(k_eps, (batch, latent_dim), jnp.float32)
    params = init_params(k_params, state_dim, action_dim, latent_dim, hidden_size)

    u_r, mean_r, std_r = vae_forward_ref(state, action, eps, params, max_action)

    # Default: whole batch in one grid step.
    u, mean, std = vae_forward(state, action, eps, params, max_action)
    jax.block_until_ready((u, mean, std))
    assert u.shape == (batch, action_dim)
    assert mean.shape == (batch, latent_dim)
    assert std.shape == (batch, latent_dim)
    assert jnp.allclose(u, u_r, atol=1e-4)
    assert jnp.allclose(mean, mean_r, atol=1e-4)
    assert jnp.allclose(std, std_r, atol=1e-4)

    # Two parallel grid steps (what you'd use on v7x for the megacore split).
    u2, mean2, std2 = vae_forward(state, action, eps, params, max_action,
                                  block_b=128)
    jax.block_until_ready((u2, mean2, std2))
    assert jnp.allclose(u2, u_r, atol=1e-4)
    assert jnp.allclose(mean2, mean_r, atol=1e-4)
    assert jnp.allclose(std2, std_r, atol=1e-4)

    print("KERNEL_OK")
</pallas_src>

<mosaic_0001>
module attributes {stable_mosaic.version = 11 : i64} {
  func.func @_vae_kernel(%arg0: i32, %arg1: memref<32x256xf32, #tpu.memory_space<vmem>>, %arg2: memref<64x24xf32, #tpu.memory_space<vmem>>, %arg3: memref<64x1xf32, #tpu.memory_space<vmem>>, %arg4: memref<64x64xf32, #tpu.memory_space<vmem>>, %arg5: memref<64x1xf32, #tpu.memory_space<vmem>>, %arg6: memref<16x64xf32, #tpu.memory_space<vmem>>, %arg7: memref<16x1xf32, #tpu.memory_space<vmem>>, %arg8: memref<64x16xf32, #tpu.memory_space<vmem>>, %arg9: memref<64x8xf32, #tpu.memory_space<vmem>>, %arg10: memref<64x1xf32, #tpu.memory_space<vmem>>, %arg11: memref<64x64xf32, #tpu.memory_space<vmem>>, %arg12: memref<64x1xf32, #tpu.memory_space<vmem>>, %arg13: memref<8x64xf32, #tpu.memory_space<vmem>>, %arg14: memref<8x1xf32, #tpu.memory_space<vmem>>, %arg15: memref<24x256xf32, #tpu.memory_space<vmem>>) attributes {dimension_semantics = [#tpu.dimension_semantics<parallel>], iteration_bounds = array<i64: 1>, scalar_prefetch = 0 : i64, scratch_operands = 0 : i64, tpu.core_type = #tpu.core_type<tc>, window_params = [{transform_indices = @transform_0, window_bounds = array<i64: 32, 256>}, {pipeline_mode = #tpu.pipeline_mode<synchronous>, transform_indices = @transform_1, window_bounds = array<i64: 64, 24>}, {pipeline_mode = #tpu.pipeline_mode<synchronous>, transform_indices = @transform_2, window_bounds = array<i64: 64, 1>}, {pipeline_mode = #tpu.pipeline_mode<synchronous>, transform_indices = @transform_3, window_bounds = array<i64: 64, 64>}, {pipeline_mode = #tpu.pipeline_mode<synchronous>, transform_indices = @transform_4, window_bounds = array<i64: 64, 1>}, {pipeline_mode = #tpu.pipeline_mode<synchronous>, transform_indices = @transform_5, window_bounds = array<i64: 16, 64>}, {pipeline_mode = #tpu.pipeline_mode<synchronous>, transform_indices = @transform_6, window_bounds = array<i64: 16, 1>}, {pipeline_mode = #tpu.pipeline_mode<synchronous>, transform_indices = @transform_7, window_bounds = array<i64: 64, 16>}, {pipeline_mode = #tpu.pipeline_mode<synchronous>, transform_indices = @transform_8, window_bounds = array<i64: 64, 8>}, {pipeline_mode = #tpu.pipeline_mode<synchronous>, transform_indices = @transform_9, window_bounds = array<i64: 64, 1>}, {pipeline_mode = #tpu.pipeline_mode<synchronous>, transform_indices = @transform_10, window_bounds = array<i64: 64, 64>}, {pipeline_mode = #tpu.pipeline_mode<synchronous>, transform_indices = @transform_11, window_bounds = array<i64: 64, 1>}, {pipeline_mode = #tpu.pipeline_mode<synchronous>, transform_indices = @transform_12, window_bounds = array<i64: 8, 64>}, {pipeline_mode = #tpu.pipeline_mode<synchronous>, transform_indices = @transform_13, window_bounds = array<i64: 8, 1>}, {transform_indices = @transform_14, window_bounds = array<i64: 24, 256>}]} {
    %c0 = arith.constant 0 : index
    %c0_0 = arith.constant 0 : index
    %0 = vector.load %arg1[%c0, %c0_0] : memref<32x256xf32, #tpu.memory_space<vmem>>, vector<24x256xf32>
    %c0_1 = arith.constant 0 : index
    %c0_2 = arith.constant 0 : index
    %1 = vector.load %arg1[%c0_1, %c0_2] : memref<32x256xf32, #tpu.memory_space<vmem>>, vector<16x256xf32>
    %c24 = arith.constant 24 : index
    %c0_3 = arith.constant 0 : index
    %2 = vector.load %arg1[%c24, %c0_3] : memref<32x256xf32, #tpu.memory_space<vmem>>, vector<8x256xf32>
    %c0_4 = arith.constant 0 : index
    %c0_5 = arith.constant 0 : index
    %3 = vector.load %arg2[%c0_4, %c0_5] : memref<64x24xf32, #tpu.memory_space<vmem>>, vector<64x24xf32>
    %cst = arith.constant dense<0.000000e+00> : vector<64x256xf32>
    %4 = tpu.matmul %3, %0, %cst {dimension_numbers = #tpu.dot_dimension_numbers<[1], [0], [0], [1], [0, 0, 1, 1], [], []>} : vector<64x24xf32>, vector<24x256xf32>, vector<64x256xf32> -> vector<64x256xf32>
    %c0_6 = arith.constant 0 : index
    %c0_7 = arith.constant 0 : index
    %5 = vector.load %arg3[%c0_6, %c0_7] : memref<64x1xf32, #tpu.memory_space<vmem>>, vector<64x1xf32>
    %6 = vector.broadcast %5 : vector<64x1xf32> to vector<64x256xf32>
    %7 = arith.addf %4, %6 : vector<64x256xf32>
    %cst_8 = arith.constant 0.000000e+00 : f32
    %8 = vector.broadcast %cst_8 : f32 to vector<64x256xf32>
    %9 = arith.maximumf %7, %8 : vector<64x256xf32>
    %c0_9 = arith.constant 0 : index
    %c0_10 = arith.constant 0 : index
    %10 = vector.load %arg4[%c0_9, %c0_10] : memref<64x64xf32, #tpu.memory_space<vmem>>, vector<64x64xf32>
    %cst_11 = arith.constant dense<0.000000e+00> : vector<64x256xf32>
    %11 = tpu.matmul %10, %9, %cst_11 {dimension_numbers = #tpu.dot_dimension_numbers<[1], [0], [0], [1], [0, 0, 1, 1], [], []>} : vector<64x64xf32>, vector<64x256xf32>, vector<64x256xf32> -> vector<64x256xf32>
    %c0_12 = arith.constant 0 : index
    %c0_13 = arith.constant 0 : index
    %12 = vector.load %arg5[%c0_12, %c0_13] : memref<64x1xf32, #tpu.memory_space<vmem>>, vector<64x1xf32>
    %13 = vector.broadcast %12 : vector<64x1xf32> to vector<64x256xf32>
    %14 = arith.addf %11, %13 : vector<64x256xf32>
    %cst_14 = arith.constant 0.000000e+00 : f32
    %15 = vector.broadcast %cst_14 : f32 to vector<64x256xf32>
    %16 = arith.maximumf %14, %15 : vector<64x256xf32>
    %c0_15 = arith.constant 0 : index
    %c0_16 = arith.constant 0 : index
    %17 = vector.load %arg6[%c0_15, %c0_16] : memref<16x64xf32, #tpu.memory_space<vmem>>, vector<16x64xf32>
    %cst_17 = arith.constant dense<0.000000e+00> : vector<16x256xf32>
    %18 = tpu.matmul %17, %16, %cst_17 {dimension_numbers = #tpu.dot_dimension_numbers<[1], [0], [0], [1], [0, 0, 1, 1], [], []>} : vector<16x64xf32>, vector<64x256xf32>, vector<16x256xf32> -> vector<16x256xf32>
    %c0_18 = arith.constant 0 : index
    %c0_19 = arith.constant 0 : index
    %19 = vector.load %arg7[%c0_18, %c0_19] : memref<16x1xf32, #tpu.memory_space<vmem>>, vector<16x1xf32>
    %20 = vector.broadcast %19 : vector<16x1xf32> to vector<16x256xf32>
    %21 = arith.addf %18, %20 : vector<16x256xf32>
    %22 = vector.extract_strided_slice %21 {offsets = [0, 0], sizes = [8, 256], strides = [1, 1]} : vector<16x256xf32> to vector<8x256xf32>
    %23 = vector.extract_strided_slice %21 {offsets = [8, 0], sizes = [8, 256], strides = [1, 1]} : vector<16x256xf32> to vector<8x256xf32>
    %cst_20 = arith.constant -4.000000e+00 : f32
    %cst_21 = arith.constant 1.500000e+01 : f32
    %24 = vector.broadcast %cst_20 : f32 to vector<8x256xf32>
    %25 = arith.maximumf %24, %23 : vector<8x256xf32>
    %26 = vector.broadcast %cst_21 : f32 to vector<8x256xf32>
    %27 = arith.minimumf %26, %25 : vector<8x256xf32>
    %28 = math.exp %27 : vector<8x256xf32>
    %29 = arith.mulf %28, %2 : vector<8x256xf32>
    %30 = arith.addf %22, %29 : vector<8x256xf32>
    %c0_22 = arith.constant 0 : index
    %c0_23 = arith.constant 0 : index
    %31 = vector.load %arg8[%c0_22, %c0_23] : memref<64x16xf32, #tpu.memory_space<vmem>>, vector<64x16xf32>
    %cst_24 = arith.constant dense<0.000000e+00> : vector<64x256xf32>
    %32 = tpu.matmul %31, %1, %cst_24 {dimension_numbers = #tpu.dot_dimension_numbers<[1], [0], [0], [1], [0, 0, 1, 1], [], []>} : vector<64x16xf32>, vector<16x256xf32>, vector<64x256xf32> -> vector<64x256xf32>
    %c0_25 = arith.constant 0 : index
    %c0_26 = arith.constant 0 : index
    %33 = vector.load %arg9[%c0_25, %c0_26] : memref<64x8xf32, #tpu.memory_space<vmem>>, vector<64x8xf32>
    %cst_27 = arith.constant dense<0.000000e+00> : vector<64x256xf32>
    %34 = tpu.matmul %33, %30, %cst_27 {dimension_numbers = #tpu.dot_dimension_numbers<[1], [0], [0], [1], [0, 0, 1, 1], [], []>} : vector<64x8xf32>, vector<8x256xf32>, vector<64x256xf32> -> vector<64x256xf32>
    %35 = arith.addf %32, %34 : vector<64x256xf32>
    %c0_28 = arith.constant 0 : index
    %c0_29 = arith.constant 0 : index
    %36 = vector.load %arg10[%c0_28, %c0_29] : memref<64x1xf32, #tpu.memory_space<vmem>>, vector<64x1xf32>
    %37 = vector.broadcast %36 : vector<64x1xf32> to vector<64x256xf32>
    %38 = arith.addf %35, %37 : vector<64x256xf32>
    %cst_30 = arith.constant 0.000000e+00 : f32
    %39 = vector.broadcast %cst_30 : f32 to vector<64x256xf32>
    %40 = arith.maximumf %38, %39 : vector<64x256xf32>
    %c0_31 = arith.constant 0 : index
    %c0_32 = arith.constant 0 : index
    %41 = vector.load %arg11[%c0_31, %c0_32] : memref<64x64xf32, #tpu.memory_space<vmem>>, vector<64x64xf32>
    %cst_33 = arith.constant dense<0.000000e+00> : vector<64x256xf32>
    %42 = tpu.matmul %41, %40, %cst_33 {dimension_numbers = #tpu.dot_dimension_numbers<[1], [0], [0], [1], [0, 0, 1, 1], [], []>} : vector<64x64xf32>, vector<64x256xf32>, vector<64x256xf32> -> vector<64x256xf32>
    %c0_34 = arith.constant 0 : index
    %c0_35 = arith.constant 0 : index
    %43 = vector.load %arg12[%c0_34, %c0_35] : memref<64x1xf32, #tpu.memory_space<vmem>>, vector<64x1xf32>
    %44 = vector.broadcast %43 : vector<64x1xf32> to vector<64x256xf32>
    %45 = arith.addf %42, %44 : vector<64x256xf32>
    %cst_36 = arith.constant 0.000000e+00 : f32
    %46 = vector.broadcast %cst_36 : f32 to vector<64x256xf32>
    %47 = arith.maximumf %45, %46 : vector<64x256xf32>
    %c0_37 = arith.constant 0 : index
    %c0_38 = arith.constant 0 : index
    %48 = vector.load %arg13[%c0_37, %c0_38] : memref<8x64xf32, #tpu.memory_space<vmem>>, vector<8x64xf32>
    %cst_39 = arith.constant dense<0.000000e+00> : vector<8x256xf32>
    %49 = tpu.matmul %48, %47, %cst_39 {dimension_numbers = #tpu.dot_dimension_numbers<[1], [0], [0], [1], [0, 0, 1, 1], [], []>} : vector<8x64xf32>, vector<64x256xf32>, vector<8x256xf32> -> vector<8x256xf32>
    %c0_40 = arith.constant 0 : index
    %c0_41 = arith.constant 0 : index
    %50 = vector.load %arg14[%c0_40, %c0_41] : memref<8x1xf32, #tpu.memory_space<vmem>>, vector<8x1xf32>
    %51 = vector.broadcast %50 : vector<8x1xf32> to vector<8x256xf32>
    %52 = arith.addf %49, %51 : vector<8x256xf32>
    %53 = math.tanh %52 : vector<8x256xf32>
    %cst_42 = arith.constant 1.000000e+00 : f32
    %54 = vector.broadcast %cst_42 : f32 to vector<8x256xf32>
    %55 = arith.mulf %54, %53 : vector<8x256xf32>
    %c0_43 = arith.constant 0 : index
    %c0_44 = arith.constant 0 : index
    %56 = vector.load %arg15[%c0_43, %c0_44] : memref<24x256xf32, #tpu.memory_space<vmem>>, vector<8x256xf32>
    tpu.vector_store %arg15[%c0_43, %c0_44], %55 {strides = array<i32>} : memref<24x256xf32, #tpu.memory_space<vmem>>, vector<8x256xf32>,
    %c8 = arith.constant 8 : index
    %c0_45 = arith.constant 0 : index
    %57 = vector.load %arg15[%c8, %c0_45] : memref<24x256xf32, #tpu.memory_space<vmem>>, vector<8x256xf32>
    tpu.vector_store %arg15[%c8, %c0_45], %22 {strides = array<i32>} : memref<24x256xf32, #tpu.memory_space<vmem>>, vector<8x256xf32>,
    %c16 = arith.constant 16 : index
    %c0_46 = arith.constant 0 : index
    %58 = vector.load %arg15[%c16, %c0_46] : memref<24x256xf32, #tpu.memory_space<vmem>>, vector<8x256xf32>
    tpu.vector_store %arg15[%c16, %c0_46], %28 {strides = array<i32>} : memref<24x256xf32, #tpu.memory_space<vmem>>, vector<8x256xf32>,
    return
  }
  func.func @transform_0(%arg0: i32) -> (i32, i32) {
    %c0_i32 = arith.constant 0 : i32
    %c0_i32_0 = arith.constant 0 : i32
    return %c0_i32, %arg0 : i32, i32
  }
  func.func @transform_1(%arg0: i32) -> (i32, i32) {
    %c0_i32 = arith.constant 0 : i32
    %c0_i32_0 = arith.constant 0 : i32
    %c0_i32_1 = arith.constant 0 : i32
    return %c0_i32, %c0_i32_0 : i32, i32
  }
  func.func @transform_2(%arg0: i32) -> (i32, i32) {
    %c0_i32 = arith.constant 0 : i32
    %c0_i32_0 = arith.constant 0 : i32
    %c0_i32_1 = arith.constant 0 : i32
    return %c0_i32, %c0_i32_0 : i32, i32
  }
  func.func @transform_3(%arg0: i32) -> (i32, i32) {
    %c0_i32 = arith.constant 0 : i32
    %c0_i32_0 = arith.constant 0 : i32
    %c0_i32_1 = arith.constant 0 : i32
    return %c0_i32, %c0_i32_0 : i32, i32
  }
  func.func @transform_4(%arg0: i32) -> (i32, i32) {
    %c0_i32 = arith.constant 0 : i32
    %c0_i32_0 = arith.constant 0 : i32
    %c0_i32_1 = arith.constant 0 : i32
    return %c0_i32, %c0_i32_0 : i32, i32
  }
  func.func @transform_5(%arg0: i32) -> (i32, i32) {
    %c0_i32 = arith.constant 0 : i32
    %c0_i32_0 = arith.constant 0 : i32
    %c0_i32_1 = arith.constant 0 : i32
    return %c0_i32, %c0_i32_0 : i32, i32
  }
  func.func @transform_6(%arg0: i32) -> (i32, i32) {
    %c0_i32 = arith.constant 0 : i32
    %c0_i32_0 = arith.constant 0 : i32
    %c0_i32_1 = arith.constant 0 : i32
    return %c0_i32, %c0_i32_0 : i32, i32
  }
  func.func @transform_7(%arg0: i32) -> (i32, i32) {
    %c0_i32 = arith.constant 0 : i32
    %c0_i32_0 = arith.constant 0 : i32
    %c0_i32_1 = arith.constant 0 : i32
    return %c0_i32, %c0_i32_0 : i32, i32
  }
  func.func @transform_8(%arg0: i32) -> (i32, i32) {
    %c0_i32 = arith.constant 0 : i32
    %c0_i32_0 = arith.constant 0 : i32
    %c0_i32_1 = arith.constant 0 : i32
    return %c0_i32, %c0_i32_0 : i32, i32
  }
  func.func @transform_9(%arg0: i32) -> (i32, i32) {
    %c0_i32 = arith.constant 0 : i32
    %c0_i32_0 = arith.constant 0 : i32
    %c0_i32_1 = arith.constant 0 : i32
    return %c0_i32, %c0_i32_0 : i32, i32
  }
  func.func @transform_10(%arg0: i32) -> (i32, i32) {
    %c0_i32 = arith.constant 0 : i32
    %c0_i32_0 = arith.constant 0 : i32
    %c0_i32_1 = arith.constant 0 : i32
    return %c0_i32, %c0_i32_0 : i32, i32
  }
  func.func @transform_11(%arg0: i32) -> (i32, i32) {
    %c0_i32 = arith.constant 0 : i32
    %c0_i32_0 = arith.constant 0 : i32
    %c0_i32_1 = arith.constant 0 : i32
    return %c0_i32, %c0_i32_0 : i32, i32
  }
  func.func @transform_12(%arg0: i32) -> (i32, i32) {
    %c0_i32 = arith.constant 0 : i32
    %c0_i32_0 = arith.constant 0 : i32
    %c0_i32_1 = arith.constant 0 : i32
    return %c0_i32, %c0_i32_0 : i32, i32
  }
  func.func @transform_13(%arg0: i32) -> (i32, i32) {
    %c0_i32 = arith.constant 0 : i32
    %c0_i32_0 = arith.constant 0 : i32
    %c0_i32_1 = arith.constant 0 : i32
    return %c0_i32, %c0_i32_0 : i32, i32
  }
  func.func @transform_14(%arg0: i32) -> (i32, i32) {
    %c0_i32 = arith.constant 0 : i32
    %c0_i32_0 = arith.constant 0 : i32
    return %c0_i32, %arg0 : i32, i32
  }
}

</mosaic_0001>

<llo_original>
// kernel: tpu_custom_call.1
$region0: #{tpu_custom_call.1}
  #allocation0 [shape = 'u32[]', space=smem, size = 0x4, offset = 0x4, fixed_abs, tag = 'smem constant byte address 0x4 - core index']
  #allocation1 [shape = 'u32[144,128]{1,0:T(1,128)}', space=vmem, size = 0x12000, scoped, tag = 'internal scratch']
  %s0 = inlined_call_operand.vmem [shape: f32[32,256], index: 0, kind: input, shape index: {}]
  %s1 = inlined_call_operand.vmem [shape: f32[64,24], index: 1, kind: input, shape index: {}]
  %s2 = inlined_call_operand.vmem [shape: f32[64,1], index: 2, kind: input, shape index: {}]
  %s3 = inlined_call_operand.vmem [shape: f32[64,64], index: 3, kind: input, shape index: {}]
  %s4 = inlined_call_operand.vmem [shape: f32[64,1], index: 4, kind: input, shape index: {}]
  %s5 = inlined_call_operand.vmem [shape: f32[16,64], index: 5, kind: input, shape index: {}]
  %s6 = inlined_call_operand.vmem [shape: f32[16,1], index: 6, kind: input, shape index: {}]
  %s7 = inlined_call_operand.vmem [shape: f32[64,16], index: 7, kind: input, shape index: {}]
  %s8 = inlined_call_operand.vmem [shape: f32[64,8], index: 8, kind: input, shape index: {}]
  %s9 = inlined_call_operand.vmem [shape: f32[64,1], index: 9, kind: input, shape index: {}]
  %s10 = inlined_call_operand.vmem [shape: f32[64,64], index: 10, kind: input, shape index: {}]
  %s11 = inlined_call_operand.vmem [shape: f32[64,1], index: 11, kind: input, shape index: {}]
  %s12 = inlined_call_operand.vmem [shape: f32[8,64], index: 12, kind: input, shape index: {}]
  %s13 = inlined_call_operand.vmem [shape: f32[8,1], index: 13, kind: input, shape index: {}]
  %s14 = inlined_call_operand.hbm [shape: f32[24,256], index: 14, kind: output, shape index: {}]
  %s15 = sld [smem:[#allocation0]]
  $region66: #{tpu_custom_call.1} parent=0
    _
  %s17 = ssub.s32 1, %s15
  %s18 = scalar_select 0, %s17, %s15
  $region1: #{tpu_custom_call.1} parent=0
    #allocation2 [shape = 'u8[24576]{0}', space=vmem, size = 0x6000, scoped, tag = 'output window, operand 0, single buffered']
    #allocation3 [shape = 's32[1]{0}', space=sflag, size = 0x4, scoped, tag = 'scoped memory for tpu_custom_call.1']
    %19 = vsyncpa [#allocation3], 0
    // Predicated region
    $region2: #{tpu_custom_call.1} parent=1 // pred_check
      _
    $region3: #{tpu_custom_call.1} parent=1 // pred_check_branch
      %21 = sbr.rel (0) target = $region5
    $region4: #{tpu_custom_call.1} parent=1 // pred_region
      _
    $region5: #{tpu_custom_call.1} parent=1 // pred_fallthru
      _
    // Predicated region
    $region6: #{tpu_custom_call.1} parent=1 // pred_check
      _
    $region7: #{tpu_custom_call.1} parent=1 // pred_check_branch
      %23 = sbr.rel (0) target = $region9
    $region8: #{tpu_custom_call.1} parent=1 // pred_region
      _
    $region9: #{tpu_custom_call.1} parent=1 // pred_fallthru
      _
    // Predicated region
    $region10: #{tpu_custom_call.1} parent=1 // pred_check
      _
    $region11: #{tpu_custom_call.1} parent=1 // pred_check_branch
      %25 = sbr.rel (0) target = $region13
    $region12: #{tpu_custom_call.1} parent=1 // pred_region
      _
    $region13: #{tpu_custom_call.1} parent=1 // pred_fallthru
      _
    // Predicated region
    $region14: #{tpu_custom_call.1} parent=1 // pred_check
      _
    $region15: #{tpu_custom_call.1} parent=1 // pred_check_branch
      %27 = sbr.rel (0) target = $region17
    $region16: #{tpu_custom_call.1} parent=1 // pred_region
      _
    $region17: #{tpu_custom_call.1} parent=1 // pred_fallthru
      _
    // Predicated region
    $region18: #{tpu_custom_call.1} parent=1 // pred_check
      _
    $region19: #{tpu_custom_call.1} parent=1 // pred_check_branch
      %29 = sbr.rel (0) target = $region21
    $region20: #{tpu_custom_call.1} parent=1 // pred_region
      _
    $region21: #{tpu_custom_call.1} parent=1 // pred_fallthru
      _
    // Predicated region
    $region22: #{tpu_custom_call.1} parent=1 // pred_check
      _
    $region23: #{tpu_custom_call.1} parent=1 // pred_check_branch
      %31 = sbr.rel (0) target = $region25
    $region24: #{tpu_custom_call.1} parent=1 // pred_region
      _
    $region25: #{tpu_custom_call.1} parent=1 // pred_fallthru
      _
    // Predicated region
    $region26: #{tpu_custom_call.1} parent=1 // pred_check
      _
    $region27: #{tpu_custom_call.1} parent=1 // pred_check_branch
      %33 = sbr.rel (0) target = $region29
    $region28: #{tpu_custom_call.1} parent=1 // pred_region
      _
    $region29: #{tpu_custom_call.1} parent=1 // pred_fallthru
      _
    // Predicated region
    $region30: #{tpu_custom_call.1} parent=1 // pred_check
      _
    $region31: #{tpu_custom_call.1} parent=1 // pred_check_branch
      %35 = sbr.rel (0) target = $region33
    $region32: #{tpu_custom_call.1} parent=1 // pred_region
      _
    $region33: #{tpu_custom_call.1} parent=1 // pred_fallthru
      _
    // Predicated region
    $region34: #{tpu_custom_call.1} parent=1 // pred_check
      _
    $region35: #{tpu_custom_call.1} parent=1 // pred_check_branch
      %37 = sbr.rel (0) target = $region37
    $region36: #{tpu_custom_call.1} parent=1 // pred_region
      _
    $region37: #{tpu_custom_call.1} parent=1 // pred_fallthru
      _
    // Predicated region
    $region38: #{tpu_custom_call.1} parent=1 // pred_check
      _
    $region39: #{tpu_custom_call.1} parent=1 // pred_check_branch
      %39 = sbr.rel (0) target = $region41
    $region40: #{tpu_custom_call.1} parent=1 // pred_region
      _
    $region41: #{tpu_custom_call.1} parent=1 // pred_fallthru
      _
    // Predicated region
    $region42: #{tpu_custom_call.1} parent=1 // pred_check
      _
    $region43: #{tpu_custom_call.1} parent=1 // pred_check_branch
      %41 = sbr.rel (0) target = $region45
    $region44: #{tpu_custom_call.1} parent=1 // pred_region
      _
    $region45: #{tpu_custom_call.1} parent=1 // pred_fallthru
      _
    // Predicated region
    $region46: #{tpu_custom_call.1} parent=1 // pred_check
      _
    $region47: #{tpu_custom_call.1} parent=1 // pred_check_branch
      %43 = sbr.rel (0) target = $region49
    $region48: #{tpu_custom_call.1} parent=1 // pred_region
      _
    $region49: #{tpu_custom_call.1} parent=1 // pred_fallthru
      _
    // Predicated region
    $region50: #{tpu_custom_call.1} parent=1 // pred_check
      _
    $region51: #{tpu_custom_call.1} parent=1 // pred_check_branch
      %45 = sbr.rel (0) target = $region53
    $region52: #{tpu_custom_call.1} parent=1 // pred_region
      _
    $region53: #{tpu_custom_call.1} parent=1 // pred_fallthru
      _
    // Predicated region
    $region54: #{tpu_custom_call.1} parent=1 // pred_check
      _
    $region55: #{tpu_custom_call.1} parent=1 // pred_check_branch
      %47 = sbr.rel (0) target = $region57
    $region56: #{tpu_custom_call.1} parent=1 // pred_region
      _
    $region57: #{tpu_custom_call.1} parent=1 // pred_fallthru
      _
    %v48 = vld [vmem:[%s0] sm:$0xff]
    %v49 = vld [vmem:[%s0 + $0x8] sm:$0xff]
    %v50 = vld [vmem:[%s0 + $0x10] sm:$0xff]
    %v51 = vld [vmem:[%s0 + $0x18] sm:$0xff]
    %v52 = vld [vmem:[%s0 + $0x20] sm:$0xff]
    %v53 = vld [vmem:[%s0 + $0x28] sm:$0xff]
    %v54 = vld [vmem:[%s0 + $0x30] sm:$0xff]
    %v55 = vld [vmem:[%s0 + $0x38] sm:$0xff]
    %v56 = vld [vmem:[%s1] sm:$0xff]
    %v57 = vld [vmem:[%s1 + $0x8] sm:$0xff]
    %v58 = vld [vmem:[%s1 + $0x10] sm:$0xff]
    %v59 = vld [vmem:[%s1 + $0x18] sm:$0xff]
    %v60 = vld [vmem:[%s1 + $0x20] sm:$0xff]
    %v61 = vld [vmem:[%s1 + $0x28] sm:$0xff]
    %v62 = vld [vmem:[%s1 + $0x30] sm:$0xff]
    %v63 = vld [vmem:[%s1 + $0x38] sm:$0xff]
    %v64 = vld [vmem:[%s2] sm:$0xff]
    %v65 = vld [vmem:[%s2 + $0x8] sm:$0xff]
    %v66 = vld [vmem:[%s2 + $0x10] sm:$0xff]
    %v67 = vld [vmem:[%s2 + $0x18] sm:$0xff]
    %v68 = vld [vmem:[%s2 + $0x20] sm:$0xff]
    %v69 = vld [vmem:[%s2 + $0x28] sm:$0xff]
    %v70 = vld [vmem:[%s2 + $0x30] sm:$0xff]
    %v71 = vld [vmem:[%s2 + $0x38] sm:$0xff]
    %73 = vset.pattern.permute.xlu0 0
    %74 = vperm.xlu0 %73, %v64
    %v75 = vpop.permute.xlu0 %74
    %78 = vset.pattern.permute.xlu0 0
    %79 = vperm.xlu0 %78, %v65
    %v80 = vpop.permute.xlu0 %79
    %83 = vset.pattern.permute.xlu0 0
    %84 = vperm.xlu0 %83, %v66
    %v85 = vpop.permute.xlu0 %84
    %88 = vset.pattern.permute.xlu0 0
    %89 = vperm.xlu0 %88, %v67
    %v90 = vpop.permute.xlu0 %89
    %93 = vset.pattern.permute.xlu0 0
    %94 = vperm.xlu0 %93, %v68
    %v95 = vpop.permute.xlu0 %94
    %98 = vset.pattern.permute.xlu0 0
    %99 = vperm.xlu0 %98, %v69
    %v100 = vpop.permute.xlu0 %99
    %103 = vset.pattern.permute.xlu0 0
    %104 = vperm.xlu0 %103, %v70
    %v105 = vpop.permute.xlu0 %104
    %108 = vset.pattern.permute.xlu0 0
    %109 = vperm.xlu0 %108, %v71
    %v110 = vpop.permute.xlu0 %109
    %vm112 = vcmask 195584
    %v114 = vsel %vm112, %v56, 0
    %v117 = vsel %vm112, %v57, 0
    %v120 = vsel %vm112, %v58, 0
    %v123 = vsel %vm112, %v59, 0
    %v126 = vsel %vm112, %v60, 0
    %v129 = vsel %vm112, %v61, 0
    %v132 = vsel %vm112, %v62, 0
    %v135 = vsel %vm112, %v63, 0
    %137 = vmatprep.subr.mxu0 %v49
    %138 = vmatpush1.msra.mxu0 %v48
    %139 = vmatprep.subr.mxu0 %v51
    %140 = vmatpush1.msra.mxu0 %v50
    %141 = vmatprep.subr.mxu0 %v53
    %142 = vmatpush1.msra.mxu0 %v52
    %143 = vmatprep.subr.mxu0 0.0
    %144 = vmatpush1.msra.mxu0 0.0
    %145 = vmatprep.subr.mxu0 0.0
    %146 = vmatpush1.msra.mxu0 0.0
    %147 = vmatprep.subr.mxu0 0.0
    %148 = vmatpush1.msra.mxu0 0.0
    %149 = vmatprep.subr.mxu0 0.0
    %150 = vmatpush1.msra.mxu0 0.0
    %151 = vmatprep.subr.mxu0 0.0
    %152 = vmatpush1.msra.mxu0 0.0
    %153 = vmatprep.subr.mxu0 0.0
    %154 = vmatpush1.msra.mxu0 0.0
    %155 = vmatprep.subr.mxu0 0.0
    %156 = vmatpush1.msra.mxu0 0.0
    %157 = vmatprep.subr.mxu0 0.0
    %158 = vmatpush1.msra.mxu0 0.0
    %159 = vmatprep.subr.mxu0 0.0
    %160 = vmatpush1.msra.mxu0 0.0
    %161 = vmatprep.subr.mxu0 0.0
    %162 = vmatpush1.msra.mxu0 0.0
    %163 = vmatprep.subr.mxu0 0.0
    %164 = vmatpush1.msra.mxu0 0.0
    %165 = vmatprep.subr.mxu0 0.0
    %166 = vmatpush1.msra.mxu0 0.0
    %167 = vmatprep.subr.mxu0 0.0
    %168 = vmatpush1.msra.mxu0 0.0
    %169 = vmatprep.subr.mxu0 0.0
    %170 = vmatpush1.msra.mxu0 0.0
    %171 = vmatprep.subr.mxu0 0.0
    %172 = vmatpush1.msra.mxu0 0.0
    %173 = vmatprep.subr.mxu0 0.0
    %174 = vmatpush1.msra.mxu0 0.0
    %175 = vmatprep.subr.mxu0 0.0
    %176 = vmatpush1.msra.mxu0 0.0
    %177 = vmatprep.subr.mxu0 0.0
    %178 = vmatpush1.msra.mxu0 0.0
    %179 = vmatprep.subr.mxu0 0.0
    %180 = vmatpush1.msra.mxu0 0.0
    %181 = vmatprep.subr.mxu0 0.0
    %182 = vmatpush1.msra.mxu0 0.0
    %183 = vmatprep.subr.mxu0 0.0
    %184 = vmatpush1.msra.mxu0 0.0
    %185 = vmatprep.subr.mxu0 0.0
    %186 = vmatpush1.msra.mxu0 0.0
    %187 = vmatprep.subr.mxu0 0.0
    %188 = vmatpush1.msra.mxu0 0.0
    %189 = vmatprep.subr.mxu0 0.0
    %190 = vmatpush1.msra.mxu0 0.0
    %191 = vmatprep.subr.mxu0 0.0
    %192 = vmatpush1.msra.mxu0 0.0
    %193 = vmatprep.subr.mxu0 0.0
    %194 = vmatpush1.msra.mxu0 0.0
    %195 = vmatprep.subr.mxu0 0.0
    %196 = vmatpush1.msra.mxu0 0.0
    %197 = vmatprep.subr.mxu0 0.0
    %198 = vmatpush1.msra.mxu0 0.0
    %199 = vmatprep.subr.mxu0 0.0
    %200 = vmatpush1.msra.mxu0 0.0
    %201 = vmatprep.mubr.f32.mxu0 0.0
    %202 = vmatmul.mubr.f32.gmra.mrb[0].mxu0 %v114
    %v203 = vpop.f32.mrb[0].mxu0
    %v204 = vadd.f32 %v75, %v203
    %v205 = vpop.f32.mrb[0].mxu0
    %v206 = vadd.f32 %v75, %v205
    %207 = vmatprep.mubr.f32.mxu0 0.0
    %208 = vmatmul.mubr.f32.gmra.mrb[0].mxu0 %v117
    %v209 = vpop.f32.mrb[0].mxu0
    %v210 = vadd.f32 %v80, %v209
    %v211 = vpop.f32.mrb[0].mxu0
    %v212 = vadd.f32 %v80, %v211
    %213 = vmatprep.mubr.f32.mxu0 0.0
    %214 = vmatmul.mubr.f32.gmra.mrb[0].mxu0 %v120
    %v215 = vpop.f32.mrb[0].mxu0
    %v216 = vadd.f32 %v85, %v215
    %v217 = vpop.f32.mrb[0].mxu0
    %v218 = vadd.f32 %v85, %v217
    %219 = vmatprep.mubr.f32.mxu0 0.0
    %220 = vmatmul.mubr.f32.gmra.mrb[0].mxu0 %v123
    %v221 = vpop.f32.mrb[0].mxu0
    %v222 = vadd.f32 %v90, %v221
    %v223 = vpop.f32.mrb[0].mxu0
    %v224 = vadd.f32 %v90, %v223
    %225 = vmatprep.mubr.f32.mxu0 0.0
    %226 = vmatmul.mubr.f32.gmra.mrb[0].mxu0 %v126
    %v227 = vpop.f32.mrb[0].mxu0
    %v228 = vadd.f32 %v95, %v227
    %v229 = vpop.f32.mrb[0].mxu0
    %v230 = vadd.f32 %v95, %v229
    %231 = vmatprep.mubr.f32.mxu0 0.0
    %232 = vmatmul.mubr.f32.gmra.mrb[0].mxu0 %v129
    %v233 = vpop.f32.mrb[0].mxu0
    %v234 = vadd.f32 %v100, %v233
    %v235 = vpop.f32.mrb[0].mxu0
    %v236 = vadd.f32 %v100, %v235
    %237 = vmatprep.mubr.f32.mxu0 0.0
    %238 = vmatmul.mubr.f32.gmra.mrb[0].mxu0 %v132
    %v239 = vpop.f32.mrb[0].mxu0
    %v240 = vadd.f32 %v105, %v239
    %v241 = vpop.f32.mrb[0].mxu0
    %v242 = vadd.f32 %v105, %v241
    %243 = vmatprep.mubr.f32.mxu0 0.0
    %244 = vmatmul.mubr.f32.gmra.mrb[0].mxu0 %v135
    %v245 = vpop.f32.mrb[0].mxu0
    %v246 = vadd.f32 %v110, %v245
    %v247 = vpop.f32.mrb[0].mxu0
    %v248 = vadd.f32 %v110, %v247
    %249 = vdwg.mxu0
    %v250 = vmax.f32 %v204, 0.0
    %v251 = vmax.f32 %v206, 0.0
    %v252 = vmax.f32 %v210, 0.0
    %v253 = vmax.f32 %v212, 0.0
    %v254 = vmax.f32 %v216, 0.0
    %v255 = vmax.f32 %v218, 0.0
    %v256 = vmax.f32 %v222, 0.0
    %v257 = vmax.f32 %v224, 0.0
    %v258 = vmax.f32 %v228, 0.0
    %v259 = vmax.f32 %v230, 0.0
    %v260 = vmax.f32 %v234, 0.0
    %v261 = vmax.f32 %v236, 0.0
    %v262 = vmax.f32 %v240, 0.0
    %v263 = vmax.f32 %v242, 0.0
    %v264 = vmax.f32 %v246, 0.0
    %v265 = vmax.f32 %v248, 0.0
    %v266 = vld [vmem:[%s3] sm:$0xff]
    %v267 = vld [vmem:[%s3 + $0x8] sm:$0xff]
    %v268 = vld [vmem:[%s3 + $0x10] sm:$0xff]
    %v269 = vld [vmem:[%s3 + $0x18] sm:$0xff]
    %v270 = vld [vmem:[%s3 + $0x20] sm:$0xff]
    %v271 = vld [vmem:[%s3 + $0x28] sm:$0xff]
    %v272 = vld [vmem:[%s3 + $0x30] sm:$0xff]
    %v273 = vld [vmem:[%s3 + $0x38] sm:$0xff]
    %v274 = vld [vmem:[%s4] sm:$0xff]
    %v275 = vld [vmem:[%s4 + $0x8] sm:$0xff]
    %v276 = vld [vmem:[%s4 + $0x10] sm:$0xff]
    %v277 = vld [vmem:[%s4 + $0x18] sm:$0xff]
    %v278 = vld [vmem:[%s4 + $0x20] sm:$0xff]
    %v279 = vld [vmem:[%s4 + $0x28] sm:$0xff]
    %v280 = vld [vmem:[%s4 + $0x30] sm:$0xff]
    %v281 = vld [vmem:[%s4 + $0x38] sm:$0xff]
    %283 = vset.pattern.permute.xlu0 0
    %284 = vperm.xlu0 %283, %v274
    %v285 = vpop.permute.xlu0 %284
    %288 = vset.pattern.permute.xlu0 0
    %289 = vperm.xlu0 %288, %v275
    %v290 = vpop.permute.xlu0 %289
    %293 = vset.pattern.permute.xlu0 0
    %294 = vperm.xlu0 %293, %v276
    %v295 = vpop.permute.xlu0 %294
    %298 = vset.pattern.permute.xlu0 0
    %299 = vperm.xlu0 %298, %v277
    %v300 = vpop.permute.xlu0 %299
    %303 = vset.pattern.permute.xlu0 0
    %304 = vperm.xlu0 %303, %v278
    %v305 = vpop.permute.xlu0 %304
    %308 = vset.pattern.permute.xlu0 0
    %309 = vperm.xlu0 %308, %v279
    %v310 = vpop.permute.xlu0 %309
    %313 = vset.pattern.permute.xlu0 0
    %314 = vperm.xlu0 %313, %v280
    %v315 = vpop.permute.xlu0 %314
    %318 = vset.pattern.permute.xlu0 0
    %319 = vperm.xlu0 %318, %v281
    %v320 = vpop.permute.xlu0 %319
    %vm322 = vcmask 523264
    %v324 = vsel %vm322, %v266, 0
    %v327 = vsel %vm322, %v267, 0
    %v330 = vsel %vm322, %v268, 0
    %v333 = vsel %vm322, %v269, 0
    %v336 = vsel %vm322, %v270, 0
    %v339 = vsel %vm322, %v271, 0
    %v342 = vsel %vm322, %v272, 0
    %v345 = vsel %vm322, %v273, 0
    %347 = vmatprep.subr.mxu0 %v251
    %348 = vmatpush1.msra.mxu0 %v250
    %349 = vmatprep.subr.mxu0 %v253
    %350 = vmatpush1.msra.mxu0 %v252
    %351 = vmatprep.subr.mxu0 %v255
    %352 = vmatpush1.msra.mxu0 %v254
    %353 = vmatprep.subr.mxu0 %v257
    %354 = vmatpush1.msra.mxu0 %v256
    %355 = vmatprep.subr.mxu0 %v259
    %356 = vmatpush1.msra.mxu0 %v258
    %357 = vmatprep.subr.mxu0 %v261
    %358 = vmatpush1.msra.mxu0 %v260
    %359 = vmatprep.subr.mxu0 %v263
    %360 = vmatpush1.msra.mxu0 %v262
    %361 = vmatprep.subr.mxu0 %v265
    %362 = vmatpush1.msra.mxu0 %v264
    %363 = vmatprep.subr.mxu0 0.0
    %364 = vmatpush1.msra.mxu0 0.0
    %365 = vmatprep.subr.mxu0 0.0
    %366 = vmatpush1.msra.mxu0 0.0
    %367 = vmatprep.subr.mxu0 0.0
    %368 = vmatpush1.msra.mxu0 0.0
    %369 = vmatprep.subr.mxu0 0.0
    %370 = vmatpush1.msra.mxu0 0.0
    %371 = vmatprep.subr.mxu0 0.0
    %372 = vmatpush1.msra.mxu0 0.0
    %373 = vmatprep.subr.mxu0 0.0
    %374 = vmatpush1.msra.mxu0 0.0
    %375 = vmatprep.subr.mxu0 0.0
    %376 = vmatpush1.msra.mxu0 0.0
    %377 = vmatprep.subr.mxu0 0.0
    %378 = vmatpush1.msra.mxu0 0.0
    %379 = vmatprep.subr.mxu0 0.0
    %380 = vmatpush1.msra.mxu0 0.0
    %381 = vmatprep.subr.mxu0 0.0
    %382 = vmatpush1.msra.mxu0 0.0
    %383 = vmatprep.subr.mxu0 0.0
    %384 = vmatpush1.msra.mxu0 0.0
    %385 = vmatprep.subr.mxu0 0.0
    %386 = vmatpush1.msra.mxu0 0.0
    %387 = vmatprep.subr.mxu0 0.0
    %388 = vmatpush1.msra.mxu0 0.0
    %389 = vmatprep.subr.mxu0 0.0
    %390 = vmatpush1.msra.mxu0 0.0
    %391 = vmatprep.subr.mxu0 0.0
    %392 = vmatpush1.msra.mxu0 0.0
    %393 = vmatprep.subr.mxu0 0.0
    %394 = vmatpush1.msra.mxu0 0.0
    %395 = vmatprep.subr.mxu0 0.0
    %396 = vmatpush1.msra.mxu0 0.0
    %397 = vmatprep.subr.mxu0 0.0
    %398 = vmatpush1.msra.mxu0 0.0
    %399 = vmatprep.subr.mxu0 0.0
    %400 = vmatpush1.msra.mxu0 0.0
    %401 = vmatprep.subr.mxu0 0.0
    %402 = vmatpush1.msra.mxu0 0.0
    %403 = vmatprep.subr.mxu0 0.0
    %404 = vmatpush1.msra.mxu0 0.0
    %405 = vmatprep.subr.mxu0 0.0
    %406 = vmatpush1.msra.mxu0 0.0
    %407 = vmatprep.subr.mxu0 0.0
    %408 = vmatpush1.msra.mxu0 0.0
    %409 = vmatprep.subr.mxu0 0.0
    %410 = vmatpush1.msra.mxu0 0.0
    %411 = vmatprep.mubr.f32.mxu0 0.0
    %412 = vmatmul.mubr.f32.gmra.mrb[0].mxu0 %v324
    %v413 = vpop.f32.mrb[0].mxu0
    %v414 = vadd.f32 %v285, %v413
    %v415 = vpop.f32.mrb[0].mxu0
    %v416 = vadd.f32 %v285, %v415
    %417 = vmatprep.mubr.f32.mxu0 0.0
    %418 = vmatmul.mubr.f32.gmra.mrb[0].mxu0 %v327
    %v419 = vpop.f32.mrb[0].mxu0
    %v420 = vadd.f32 %v290, %v419
    %v421 = vpop.f32.mrb[0].mxu0
    %v422 = vadd.f32 %v290, %v421
    %423 = vmatprep.mubr.f32.mxu0 0.0
    %424 = vmatmul.mubr.f32.gmra.mrb[0].mxu0 %v330
    %v425 = vpop.f32.mrb[0].mxu0
    %v426 = vadd.f32 %v295, %v425
    %v427 = vpop.f32.mrb[0].mxu0
    %v428 = vadd.f32 %v295, %v427
    %429 = vmatprep.mubr.f32.mxu0 0.0
    %430 = vmatmul.mubr.f32.gmra.mrb[0].mxu0 %v333
    %v431 = vpop.f32.mrb[0].mxu0
    %v432 = vadd.f32 %v300, %v431
    %v433 = vpop.f32.mrb[0].mxu0
    %v434 = vadd.f32 %v300, %v433
    %435 = vmatprep.mubr.f32.mxu0 0.0
    %436 = vmatmul.mubr.f32.gmra.mrb[0].mxu0 %v336
    %v437 = vpop.f32.mrb[0].mxu0
    %v438 = vadd.f32 %v305, %v437
    %v439 = vpop.f32.mrb[0].mxu0
    %v440 = vadd.f32 %v305, %v439
    %441 = vmatprep.mubr.f32.mxu0 0.0
    %442 = vmatmul.mubr.f32.gmra.mrb[0].mxu0 %v339
    %v443 = vpop.f32.mrb[0].mxu0
    %v444 = vadd.f32 %v310, %v443
    %v445 = vpop.f32.mrb[0].mxu0
    %v446 = vadd.f32 %v310, %v445
    %447 = vmatprep.mubr.f32.mxu0 0.0
    %448 = vmatmul.mubr.f32.gmra.mrb[0].mxu0 %v342
    %v449 = vpop.f32.mrb[0].mxu0
    %v450 = vadd.f32 %v315, %v449
    %v451 = vpop.f32.mrb[0].mxu0
    %v452 = vadd.f32 %v315, %v451
    %453 = vmatprep.mubr.f32.mxu0 0.0
    %454 = vmatmul.mubr.f32.gmra.mrb[0].mxu0 %v345
    %v455 = vpop.f32.mrb[0].mxu0
    %v456 = vadd.f32 %v320, %v455
    %v457 = vpop.f32.mrb[0].mxu0
    %v458 = vadd.f32 %v320, %v457
    %459 = vdwg.mxu0
    %v460 = vmax.f32 %v414, 0.0
    %v461 = vmax.f32 %v416, 0.0
    %v462 = vmax.f32 %v420, 0.0
    %v463 = vmax.f32 %v422, 0.0
    %v464 = vmax.f32 %v426, 0.0
    %v465 = vmax.f32 %v428, 0.0
    %v466 = vmax.f32 %v432, 0.0
    %v467 = vmax.f32 %v434, 0.0
    %v468 = vmax.f32 %v438, 0.0
    %v469 = vmax.f32 %v440, 0.0
    %v470 = vmax.f32 %v444, 0.0
    %v471 = vmax.f32 %v446, 0.0
    %v472 = vmax.f32 %v450, 0.0
    %v473 = vmax.f32 %v452, 0.0
    %v474 = vmax.f32 %v456, 0.0
    %v475 = vmax.f32 %v458, 0.0
    %v476 = vld [vmem:[%s5] sm:$0xff]
    %v477 = vld [vmem:[%s5 + $0x8] sm:$0xff]
    %v478 = vld [vmem:[%s6] sm:$0xff]
    %v479 = vld [vmem:[%s6 + $0x8] sm:$0xff]
    %481 = vset.pattern.permute.xlu0 0
    %482 = vperm.xlu0 %481, %v478
    %v483 = vpop.permute.xlu0 %482
    %486 = vset.pattern.permute.xlu0 0
    %487 = vperm.xlu0 %486, %v479
    %v488 = vpop.permute.xlu0 %487
    %v491 = vsel %vm322, %v476, 0
    %v494 = vsel %vm322, %v477, 0
    %496 = vmatprep.subr.mxu0 %v461
    %497 = vmatpush1.msra.mxu0 %v460
    %498 = vmatprep.subr.mxu0 %v463
    %499 = vmatpush1.msra.mxu0 %v462
    %500 = vmatprep.subr.mxu0 %v465
    %501 = vmatpush1.msra.mxu0 %v464
    %502 = vmatprep.subr.mxu0 %v467
    %503 = vmatpush1.msra.mxu0 %v466
    %504 = vmatprep.subr.mxu0 %v469
    %505 = vmatpush1.msra.mxu0 %v468
    %506 = vmatprep.subr.mxu0 %v471
    %507 = vmatpush1.msra.mxu0 %v470
    %508 = vmatprep.subr.mxu0 %v473
    %509 = vmatpush1.msra.mxu0 %v472
    %510 = vmatprep.subr.mxu0 %v475
    %511 = vmatpush1.msra.mxu0 %v474
    %512 = vmatprep.subr.mxu0 0.0
    %513 = vmatpush1.msra.mxu0 0.0
    %514 = vmatprep.subr.mxu0 0.0
    %515 = vmatpush1.msra.mxu0 0.0
    %516 = vmatprep.subr.mxu0 0.0
    %517 = vmatpush1.msra.mxu0 0.0
    %518 = vmatprep.subr.mxu0 0.0
    %519 = vmatpush1.msra.mxu0 0.0
    %520 = vmatprep.subr.mxu0 0.0
    %521 = vmatpush1.msra.mxu0 0.0
    %522 = vmatprep.subr.mxu0 0.0
    %523 = vmatpush1.msra.mxu0 0.0
    %524 = vmatprep.subr.mxu0 0.0
    %525 = vmatpush1.msra.mxu0 0.0
    %526 = vmatprep.subr.mxu0 0.0
    %527 = vmatpush1.msra.mxu0 0.0
    %528 = vmatprep.subr.mxu0 0.0
    %529 = vmatpush1.msra.mxu0 0.0
    %530 = vmatprep.subr.mxu0 0.0
    %531 = vmatpush1.msra.mxu0 0.0
    %532 = vmatprep.subr.mxu0 0.0
    %533 = vmatpush1.msra.mxu0 0.0
    %534 = vmatprep.subr.mxu0 0.0
    %535 = vmatpush1.msra.mxu0 0.0
    %536 = vmatprep.subr.mxu0 0.0
    %537 = vmatpush1.msra.mxu0 0.0
    %538 = vmatprep.subr.mxu0 0.0
    %539 = vmatpush1.msra.mxu0 0.0
    %540 = vmatprep.subr.mxu0 0.0
    %541 = vmatpush1.msra.mxu0 0.0
    %542 = vmatprep.subr.mxu0 0.0
    %543 = vmatpush1.msra.mxu0 0.0
    %544 = vmatprep.subr.mxu0 0.0
    %545 = vmatpush1.msra.mxu0 0.0
    %546 = vmatprep.subr.mxu0 0.0
    %547 = vmatpush1.msra.mxu0 0.0
    %548 = vmatprep.subr.mxu0 0.0
    %549 = vmatpush1.msra.mxu0 0.0
    %550 = vmatprep.subr.mxu0 0.0
    %551 = vmatpush1.msra.mxu0 0.0
    %552 = vmatprep.subr.mxu0 0.0
    %553 = vmatpush1.msra.mxu0 0.0
    %554 = vmatprep.subr.mxu0 0.0
    %555 = vmatpush1.msra.mxu0 0.0
    %556 = vmatprep.subr.mxu0 0.0
    %557 = vmatpush1.msra.mxu0 0.0
    %558 = vmatprep.subr.mxu0 0.0
    %559 = vmatpush1.msra.mxu0 0.0
    %560 = vmatprep.mubr.f32.mxu0 0.0
    %561 = vmatmul.mubr.f32.gmra.mrb[0].mxu0 %v491
    %v562 = vpop.f32.mrb[0].mxu0
    %v563 = vadd.f32 %v483, %v562
    %v564 = vpop.f32.mrb[0].mxu0
    %v565 = vadd.f32 %v483, %v564
    %566 = vmatprep.mubr.f32.mxu0 0.0
    %567 = vmatmul.mubr.f32.gmra.mrb[0].mxu0 %v494
    %v568 = vpop.f32.mrb[0].mxu0
    %v569 = vadd.f32 %v488, %v568
    %v570 = vpop.f32.mrb[0].mxu0
    %v571 = vadd.f32 %v488, %v570
    %572 = vdwg.mxu0
    %v573 = vmax.f32 %v569, -4.0
    %v574 = vmax.f32 %v571, -4.0
    %v575 = vmin.f32 %v573, 15.0
    %v576 = vmin.f32 %v574, 15.0
    %v577 = vmul.f32 %v575, 1.442695
    %v578 = vpow.pop %v577
    %v579 = vmul.f32 %v576, 1.442695
    %v580 = vpow.pop %v579
    %v581 = vmul.f32 %v578, %v54
    %v582 = vmul.f32 %v580, %v55
    %v583 = vadd.f32 %v563, %v581
    %v584 = vadd.f32 %v565, %v582
    %v585 = vld [vmem:[%s7] sm:$0xff]
    %v586 = vld [vmem:[%s7 + $0x8] sm:$0xff]
    %v587 = vld [vmem:[%s7 + $0x10] sm:$0xff]
    %v588 = vld [vmem:[%s7 + $0x18] sm:$0xff]
    %v589 = vld [vmem:[%s7 + $0x20] sm:$0xff]
    %v590 = vld [vmem:[%s7 + $0x28] sm:$0xff]
    %v591 = vld [vmem:[%s7 + $0x30] sm:$0xff]
    %v592 = vld [vmem:[%s7 + $0x38] sm:$0xff]
    %v593 = vld [vmem:[%s8] sm:$0xff]
    %v594 = vld [vmem:[%s8 + $0x8] sm:$0xff]
    %v595 = vld [vmem:[%s8 + $0x10] sm:$0xff]
    %v596 = vld [vmem:[%s8 + $0x18] sm:$0xff]
    %v597 = vld [vmem:[%s8 + $0x20] sm:$0xff]
    %v598 = vld [vmem:[%s8 + $0x28] sm:$0xff]
    %v599 = vld [vmem:[%s8 + $0x30] sm:$0xff]
    %v600 = vld [vmem:[%s8 + $0x38] sm:$0xff]
    %vm601 = vcmask 64512
    %v603 = vsel %vm601, %v593, 0
    %v606 = vsel %vm601, %v594, 0
    %v609 = vsel %vm601, %v595, 0
    %v612 = vsel %vm601, %v596, 0
    %v615 = vsel %vm601, %v597, 0
    %v618 = vsel %vm601, %v598, 0
    %v621 = vsel %vm601, %v599, 0
    %v624 = vsel %vm601, %v600, 0
    %626 = vmatprep.subr.mxu0 %v584
    %627 = vmatpush1.msra.mxu0 %v583
    %628 = vmatprep.subr.mxu0 0.0
    %629 = vmatpush1.msra.mxu0 0.0
    %630 = vmatprep.subr.mxu0 0.0
    %631 = vmatpush1.msra.mxu0 0.0
    %632 = vmatprep.subr.mxu0 0.0
    %633 = vmatpush1.msra.mxu0 0.0
    %634 = vmatprep.subr.mxu0 0.0
    %635 = vmatpush1.msra.mxu0 0.0
    %636 = vmatprep.subr.mxu0 0.0
    %637 = vmatpush1.msra.mxu0 0.0
    %638 = vmatprep.subr.mxu0 0.0
    %639 = vmatpush1.msra.mxu0 0.0
    %640 = vmatprep.subr.mxu0 0.0
    %641 = vmatpush1.msra.mxu0 0.0
    %642 = vmatprep.subr.mxu0 0.0
    %643 = vmatpush1.msra.mxu0 0.0
    %644 = vmatprep.subr.mxu0 0.0
    %645 = vmatpush1.msra.mxu0 0.0
    %646 = vmatprep.subr.mxu0 0.0
    %647 = vmatpush1.msra.mxu0 0.0
    %648 = vmatprep.subr.mxu0 0.0
    %649 = vmatpush1.msra.mxu0 0.0
    %650 = vmatprep.subr.mxu0 0.0
    %651 = vmatpush1.msra.mxu0 0.0
    %652 = vmatprep.subr.mxu0 0.0
    %653 = vmatpush1.msra.mxu0 0.0
    %654 = vmatprep.subr.mxu0 0.0
    %655 = vmatpush1.msra.mxu0 0.0
    %656 = vmatprep.subr.mxu0 0.0
    %657 = vmatpush1.msra.mxu0 0.0
    %658 = vmatprep.subr.mxu0 0.0
    %659 = vmatpush1.msra.mxu0 0.0
    %660 = vmatprep.subr.mxu0 0.0
    %661 = vmatpush1.msra.mxu0 0.0
    %662 = vmatprep.subr.mxu0 0.0
    %663 = vmatpush1.msra.mxu0 0.0
    %664 = vmatprep.subr.mxu0 0.0
    %665 = vmatpush1.msra.mxu0 0.0
    %666 = vmatprep.subr.mxu0 0.0
    %667 = vmatpush1.msra.mxu0 0.0
    %668 = vmatprep.subr.mxu0 0.0
    %669 = vmatpush1.msra.mxu0 0.0
    %670 = vmatprep.subr.mxu0 0.0
    %671 = vmatpush1.msra.mxu0 0.0
    %672 = vmatprep.subr.mxu0 0.0
    %673 = vmatpush1.msra.mxu0 0.0
    %674 = vmatprep.subr.mxu0 0.0
    %675 = vmatpush1.msra.mxu0 0.0
    %676 = vmatprep.subr.mxu0 0.0
    %677 = vmatpush1.msra.mxu0 0.0
    %678 = vmatprep.subr.mxu0 0.0
    %679 = vmatpush1.msra.mxu0 0.0
    %680 = vmatprep.subr.mxu0 0.0
    %681 = vmatpush1.msra.mxu0 0.0
    %682 = vmatprep.subr.mxu0 0.0
    %683 = vmatpush1.msra.mxu0 0.0
    %684 = vmatprep.subr.mxu0 0.0
    %685 = vmatpush1.msra.mxu0 0.0
    %686 = vmatprep.subr.mxu0 0.0
    %687 = vmatpush1.msra.mxu0 0.0
    %688 = vmatprep.subr.mxu0 0.0
    %689 = vmatpush1.msra.mxu0 0.0
    %690 = vmatprep.mubr.f32.mxu0 0.0
    %691 = vmatmul.mubr.f32.gmra.mrb[0].mxu0 %v603
    %v692 = vpop.f32.mrb[0].mxu0
    %v693 = vadd.f32 0.0, %v692
    %v694 = vpop.f32.mrb[0].mxu0
    %v695 = vadd.f32 0.0, %v694
    %696 = vmatprep.mubr.f32.mxu0 0.0
    %697 = vmatmul.mubr.f32.gmra.mrb[0].mxu0 %v606
    %v698 = vpop.f32.mrb[0].mxu0
    %v699 = vadd.f32 0.0, %v698
    %v700 = vpop.f32.mrb[0].mxu0
    %v701 = vadd.f32 0.0, %v700
    %702 = vmatprep.mubr.f32.mxu0 0.0
    %703 = vmatmul.mubr.f32.gmra.mrb[0].mxu0 %v609
    %v704 = vpop.f32.mrb[0].mxu0
    %v705 = vadd.f32 0.0, %v704
    %v706 = vpop.f32.mrb[0].mxu0
    %v707 = vadd.f32 0.0, %v706
    %708 = vmatprep.mubr.f32.mxu0 0.0
    %709 = vmatmul.mubr.f32.gmra.mrb[0].mxu0 %v612
    %v710 = vpop.f32.mrb[0].mxu0
    %v711 = vadd.f32 0.0, %v710
    %v712 = vpop.f32.mrb[0].mxu0
    %v713 = vadd.f32 0.0, %v712
    %714 = vmatprep.mubr.f32.mxu0 0.0
    %715 = vmatmul.mubr.f32.gmra.mrb[0].mxu0 %v615
    %v716 = vpop.f32.mrb[0].mxu0
    %v717 = vadd.f32 0.0, %v716
    %v718 = vpop.f32.mrb[0].mxu0
    %v719 = vadd.f32 0.0, %v718
    %720 = vmatprep.mubr.f32.mxu0 0.0
    %721 = vmatmul.mubr.f32.gmra.mrb[0].mxu0 %v618
    %v722 = vpop.f32.mrb[0].mxu0
    %v723 = vadd.f32 0.0, %v722
    %v724 = vpop.f32.mrb[0].mxu0
    %v725 = vadd.f32 0.0, %v724
    %726 = vmatprep.mubr.f32.mxu0 0.0
    %727 = vmatmul.mubr.f32.gmra.mrb[0].mxu0 %v621
    %v728 = vpop.f32.mrb[0].mxu0
    %v729 = vadd.f32 0.0, %v728
    %v730 = vpop.f32.mrb[0].mxu0
    %v731 = vadd.f32 0.0, %v730
    %732 = vmatprep.mubr.f32.mxu0 0.0
    %733 = vmatmul.mubr.f32.gmra.mrb[0].mxu0 %v624
    %v734 = vpop.f32.mrb[0].mxu0
    %v735 = vadd.f32 0.0, %v734
    %v736 = vpop.f32.mrb[0].mxu0
    %v737 = vadd.f32 0.0, %v736
    %738 = vdwg.mxu0
    %vm739 = vcmask 130048
    %v741 = vsel %vm739, %v585, 0
    %v744 = vsel %vm739, %v586, 0
    %v747 = vsel %vm739, %v587, 0
    %v750 = vsel %vm739, %v588, 0
    %v753 = vsel %vm739, %v589, 0
    %v756 = vsel %vm739, %v590, 0
    %v759 = vsel %vm739, %v591, 0
    %v762 = vsel %vm739, %v592, 0
    %764 = vmatprep.subr.mxu0 %v49
    %765 = vmatpush1.msra.mxu0 %v48
    %766 = vmatprep.subr.mxu0 %v51
    %767 = vmatpush1.msra.mxu0 %v50
    %768 = vmatprep.subr.mxu0 0.0
    %769 = vmatpush1.msra.mxu0 0.0
    %770 = vmatprep.subr.mxu0 0.0
    %771 = vmatpush1.msra.mxu0 0.0
    %772 = vmatprep.subr.mxu0 0.0
    %773 = vmatpush1.msra.mxu0 0.0
    %774 = vmatprep.subr.mxu0 0.0
    %775 = vmatpush1.msra.mxu0 0.0
    %776 = vmatprep.subr.mxu0 0.0
    %777 = vmatpush1.msra.mxu0 0.0
    %778 = vmatprep.subr.mxu0 0.0
    %779 = vmatpush1.msra.mxu0 0.0
    %780 = vmatprep.subr.mxu0 0.0
    %781 = vmatpush1.msra.mxu0 0.0
    %782 = vmatprep.subr.mxu0 0.0
    %783 = vmatpush1.msra.mxu0 0.0
    %784 = vmatprep.subr.mxu0 0.0
    %785 = vmatpush1.msra.mxu0 0.0
    %786 = vmatprep.subr.mxu0 0.0
    %787 = vmatpush1.msra.mxu0 0.0
    %788 = vmatprep.subr.mxu0 0.0
    %789 = vmatpush1.msra.mxu0 0.0
    %790 = vmatprep.subr.mxu0 0.0
    %791 = vmatpush1.msra.mxu0 0.0
    %792 = vmatprep.subr.mxu0 0.0
    %793 = vmatpush1.msra.mxu0 0.0
    %794 = vmatprep.subr.mxu0 0.0
    %795 = vmatpush1.msra.mxu0 0.0
    %796 = vmatprep.subr.mxu0 0.0
    %797 = vmatpush1.msra.mxu0 0.0
    %798 = vmatprep.subr.mxu0 0.0
    %799 = vmatpush1.msra.mxu0 0.0
    %800 = vmatprep.subr.mxu0 0.0
    %801 = vmatpush1.msra.mxu0 0.0
    %802 = vmatprep.subr.mxu0 0.0
    %803 = vmatpush1.msra.mxu0 0.0
    %804 = vmatprep.subr.mxu0 0.0
    %805 = vmatpush1.msra.mxu0 0.0
    %806 = vmatprep.subr.mxu0 0.0
    %807 = vmatpush1.msra.mxu0 0.0
    %808 = vmatprep.subr.mxu0 0.0
    %809 = vmatpush1.msra.mxu0 0.0
    %810 = vmatprep.subr.mxu0 0.0
    %811 = vmatpush1.msra.mxu0 0.0
    %812 = vmatprep.subr.mxu0 0.0
    %813 = vmatpush1.msra.mxu0 0.0
    %814 = vmatprep.subr.mxu0 0.0
    %815 = vmatpush1.msra.mxu0 0.0
    %816 = vmatprep.subr.mxu0 0.0
    %817 = vmatpush1.msra.mxu0 0.0
    %818 = vmatprep.subr.mxu0 0.0
    %819 = vmatpush1.msra.mxu0 0.0
    %820 = vmatprep.subr.mxu0 0.0
    %821 = vmatpush1.msra.mxu0 0.0
    %822 = vmatprep.subr.mxu0 0.0
    %823 = vmatpush1.msra.mxu0 0.0
    %824 = vmatprep.subr.mxu0 0.0
    %825 = vmatpush1.msra.mxu0 0.0
    %826 = vmatprep.subr.mxu0 0.0
    %827 = vmatpush1.msra.mxu0 0.0
    %828 = vmatprep.mubr.f32.mxu0 0.0
    %829 = vmatmul.mubr.f32.gmra.mrb[0].mxu0 %v741
    %v830 = vpop.f32.mrb[0].mxu0
    %v831 = vadd.f32 %v693, %v830
    %v832 = vpop.f32.mrb[0].mxu0
    %v833 = vadd.f32 %v695, %v832
    %834 = vmatprep.mubr.f32.mxu0 0.0
    %835 = vmatmul.mubr.f32.gmra.mrb[0].mxu0 %v744
    %v836 = vpop.f32.mrb[0].mxu0
    %v837 = vadd.f32 %v699, %v836
    %v838 = vpop.f32.mrb[0].mxu0
    %v839 = vadd.f32 %v701, %v838
    %840 = vmatprep.mubr.f32.mxu0 0.0
    %841 = vmatmul.mubr.f32.gmra.mrb[0].mxu0 %v747
    %v842 = vpop.f32.mrb[0].mxu0
    %v843 = vadd.f32 %v705, %v842
    %v844 = vpop.f32.mrb[0].mxu0
    %v845 = vadd.f32 %v707, %v844
    %846 = vmatprep.mubr.f32.mxu0 0.0
    %847 = vmatmul.mubr.f32.gmra.mrb[0].mxu0 %v750
    %v848 = vpop.f32.mrb[0].mxu0
    %v849 = vadd.f32 %v711, %v848
    %v850 = vpop.f32.mrb[0].mxu0
    %v851 = vadd.f32 %v713, %v850
    %852 = vmatprep.mubr.f32.mxu0 0.0
    %853 = vmatmul.mubr.f32.gmra.mrb[0].mxu0 %v753
    %v854 = vpop.f32.mrb[0].mxu0
    %v855 = vadd.f32 %v717, %v854
    %v856 = vpop.f32.mrb[0].mxu0
    %v857 = vadd.f32 %v719, %v856
    %858 = vmatprep.mubr.f32.mxu0 0.0
    %859 = vmatmul.mubr.f32.gmra.mrb[0].mxu0 %v756
    %v860 = vpop.f32.mrb[0].mxu0
    %v861 = vadd.f32 %v723, %v860
    %v862 = vpop.f32.mrb[0].mxu0
    %v863 = vadd.f32 %v725, %v862
    %864 = vmatprep.mubr.f32.mxu0 0.0
    %865 = vmatmul.mubr.f32.gmra.mrb[0].mxu0 %v759
    %v866 = vpop.f32.mrb[0].mxu0
    %v867 = vadd.f32 %v729, %v866
    %v868 = vpop.f32.mrb[0].mxu0
    %v869 = vadd.f32 %v731, %v868
    %870 = vmatprep.mubr.f32.mxu0 0.0
    %871 = vmatmul.mubr.f32.gmra.mrb[0].mxu0 %v762
    %v872 = vpop.f32.mrb[0].mxu0
    %v873 = vadd.f32 %v735, %v872
    %v874 = vpop.f32.mrb[0].mxu0
    %v875 = vadd.f32 %v737, %v874
    %876 = vdwg.mxu0
    %v877 = vld [vmem:[%s9] sm:$0xff]
    %v878 = vld [vmem:[%s9 + $0x8] sm:$0xff]
    %v879 = vld [vmem:[%s9 + $0x10] sm:$0xff]
    %v880 = vld [vmem:[%s9 + $0x18] sm:$0xff]
    %v881 = vld [vmem:[%s9 + $0x20] sm:$0xff]
    %v882 = vld [vmem:[%s9 + $0x28] sm:$0xff]
    %v883 = vld [vmem:[%s9 + $0x30] sm:$0xff]
    %v884 = vld [vmem:[%s9 + $0x38] sm:$0xff]
    %886 = vset.pattern.permute.xlu0 0
    %887 = vperm.xlu0 %886, %v877
    %v888 = vpop.permute.xlu0 %887
    %891 = vset.pattern.permute.xlu0 0
    %892 = vperm.xlu0 %891, %v878
    %v893 = vpop.permute.xlu0 %892
    %896 = vset.pattern.permute.xlu0 0
    %897 = vperm.xlu0 %896, %v879
    %v898 = vpop.permute.xlu0 %897
    %901 = vset.pattern.permute.xlu0 0
    %902 = vperm.xlu0 %901, %v880
    %v903 = vpop.permute.xlu0 %902
    %906 = vset.pattern.permute.xlu0 0
    %907 = vperm.xlu0 %906, %v881
    %v908 = vpop.permute.xlu0 %907
    %911 = vset.pattern.permute.xlu0 0
    %912 = vperm.xlu0 %911, %v882
    %v913 = vpop.permute.xlu0 %912
    %916 = vset.pattern.permute.xlu0 0
    %917 = vperm.xlu0 %916, %v883
    %v918 = vpop.permute.xlu0 %917
    %921 = vset.pattern.permute.xlu0 0
    %922 = vperm.xlu0 %921, %v884
    %v923 = vpop.permute.xlu0 %922
    %v925 = vadd.f32 %v831, %v888
    %v926 = vadd.f32 %v833, %v888
    %v927 = vadd.f32 %v837, %v893
    %v928 = vadd.f32 %v839, %v893
    %v929 = vadd.f32 %v843, %v898
    %v930 = vadd.f32 %v845, %v898
    %v931 = vadd.f32 %v849, %v903
    %v932 = vadd.f32 %v851, %v903
    %v933 = vadd.f32 %v855, %v908
    %v934 = vadd.f32 %v857, %v908
    %v935 = vadd.f32 %v861, %v913
    %v936 = vadd.f32 %v863, %v913
    %v937 = vadd.f32 %v867, %v918
    %v938 = vadd.f32 %v869, %v918
    %v939 = vadd.f32 %v873, %v923
    %v940 = vadd.f32 %v875, %v923
    %v941 = vmax.f32 %v925, 0.0
    %v942 = vmax.f32 %v926, 0.0
    %v943 = vmax.f32 %v927, 0.0
    %v944 = vmax.f32 %v928, 0.0
    %v945 = vmax.f32 %v929, 0.0
    %v946 = vmax.f32 %v930, 0.0
    %v947 = vmax.f32 %v931, 0.0
    %v948 = vmax.f32 %v932, 0.0
    %v949 = vmax.f32 %v933, 0.0
    %v950 = vmax.f32 %v934, 0.0
    %v951 = vmax.f32 %v935, 0.0
    %v952 = vmax.f32 %v936, 0.0
    %v953 = vmax.f32 %v937, 0.0
    %v954 = vmax.f32 %v938, 0.0
    %v955 = vmax.f32 %v939, 0.0
    %v956 = vmax.f32 %v940, 0.0
    %v957 = vld [vmem:[%s10] sm:$0xff]
    %v958 = vld [vmem:[%s10 + $0x8] sm:$0xff]
    %v959 = vld [vmem:[%s10 + $0x10] sm:$0xff]
    %v960 = vld [vmem:[%s10 + $0x18] sm:$0xff]
    %v961 = vld [vmem:[%s10 + $0x20] sm:$0xff]
    %v962 = vld [vmem:[%s10 + $0x28] sm:$0xff]
    %v963 = vld [vmem:[%s10 + $0x30] sm:$0xff]
    %v964 = vld [vmem:[%s10 + $0x38] sm:$0xff]
    %v965 = vld [vmem:[%s11] sm:$0xff]
    %v966 = vld [vmem:[%s11 + $0x8] sm:$0xff]
    %v967 = vld [vmem:[%s11 + $0x10] sm:$0xff]
    %v968 = vld [vmem:[%s11 + $0x18] sm:$0xff]
    %v969 = vld [vmem:[%s11 + $0x20] sm:$0xff]
    %v970 = vld [vmem:[%s11 + $0x28] sm:$0xff]
    %v971 = vld [vmem:[%s11 + $0x30] sm:$0xff]
    %v972 = vld [vmem:[%s11 + $0x38] sm:$0xff]
    %974 = vset.pattern.permute.xlu0 0
    %975 = vperm.xlu0 %974, %v965
    %v976 = vpop.permute.xlu0 %975
    %979 = vset.pattern.permute.xlu0 0
    %980 = vperm.xlu0 %979, %v966
    %v981 = vpop.permute.xlu0 %980
    %984 = vset.pattern.permute.xlu0 0
    %985 = vperm.xlu0 %984, %v967
    %v986 = vpop.permute.xlu0 %985
    %989 = vset.pattern.permute.xlu0 0
    %990 = vperm.xlu0 %989, %v968
    %v991 = vpop.permute.xlu0 %990
    %994 = vset.pattern.permute.xlu0 0
    %995 = vperm.xlu0 %994, %v969
    %v996 = vpop.permute.xlu0 %995
    %999 = vset.pattern.permute.xlu0 0
    %1000 = vperm.xlu0 %999, %v970
    %v1001 = vpop.permute.xlu0 %1000
    %1004 = vset.pattern.permute.xlu0 0
    %1005 = vperm.xlu0 %1004, %v971
    %v1006 = vpop.permute.xlu0 %1005
    %1009 = vset.pattern.permute.xlu0 0
    %1010 = vperm.xlu0 %1009, %v972
    %v1011 = vpop.permute.xlu0 %1010
    %v1014 = vsel %vm322, %v957, 0
    %v1017 = vsel %vm322, %v958, 0
    %v1020 = vsel %vm322, %v959, 0
    %v1023 = vsel %vm322, %v960, 0
    %v1026 = vsel %vm322, %v961, 0
    %v1029 = vsel %vm322, %v962, 0
    %v1032 = vsel %vm322, %v963, 0
    %v1035 = vsel %vm322, %v964, 0
    %1037 = vmatprep.subr.mxu0 %v942
    %1038 = vmatpush1.msra.mxu0 %v941
    %1039 = vmatprep.subr.mxu0 %v944
    %1040 = vmatpush1.msra.mxu0 %v943
    %1041 = vmatprep.subr.mxu0 %v946
    %1042 = vmatpush1.msra.mxu0 %v945
    %1043 = vmatprep.subr.mxu0 %v948
    %1044 = vmatpush1.msra.mxu0 %v947
    %1045 = vmatprep.subr.mxu0 %v950
    %1046 = vmatpush1.msra.mxu0 %v949
    %1047 = vmatprep.subr.mxu0 %v952
    %1048 = vmatpush1.msra.mxu0 %v951
    %1049 = vmatprep.subr.mxu0 %v954
    %1050 = vmatpush1.msra.mxu0 %v953
    %1051 = vmatprep.subr.mxu0 %v956
    %1052 = vmatpush1.msra.mxu0 %v955
    %1053 = vmatprep.subr.mxu0 0.0
    %1054 = vmatpush1.msra.mxu0 0.0
    %1055 = vmatprep.subr.mxu0 0.0
    %1056 = vmatpush1.msra.mxu0 0.0
    %1057 = vmatprep.subr.mxu0 0.0
    %1058 = vmatpush1.msra.mxu0 0.0
    %1059 = vmatprep.subr.mxu0 0.0
    %1060 = vmatpush1.msra.mxu0 0.0
    %1061 = vmatprep.subr.mxu0 0.0
    %1062 = vmatpush1.msra.mxu0 0.0
    %1063 = vmatprep.subr.mxu0 0.0
    %1064 = vmatpush1.msra.mxu0 0.0
    %1065 = vmatprep.subr.mxu0 0.0
    %1066 = vmatpush1.msra.mxu0 0.0
    %1067 = vmatprep.subr.mxu0 0.0
    %1068 = vmatpush1.msra.mxu0 0.0
    %1069 = vmatprep.subr.mxu0 0.0
    %1070 = vmatpush1.msra.mxu0 0.0
    %1071 = vmatprep.subr.mxu0 0.0
    %1072 = vmatpush1.msra.mxu0 0.0
    %1073 = vmatprep.subr.mxu0 0.0
    %1074 = vmatpush1.msra.mxu0 0.0
    %1075 = vmatprep.subr.mxu0 0.0
    %1076 = vmatpush1.msra.mxu0 0.0
    %1077 = vmatprep.subr.mxu0 0.0
    %1078 = vmatpush1.msra.mxu0 0.0
    %1079 = vmatprep.subr.mxu0 0.0
    %1080 = vmatpush1.msra.mxu0 0.0
    %1081 = vmatprep.subr.mxu0 0.0
    %1082 = vmatpush1.msra.mxu0 0.0
    %1083 = vmatprep.subr.mxu0 0.0
    %1084 = vmatpush1.msra.mxu0 0.0
    %1085 = vmatprep.subr.mxu0 0.0
    %1086 = vmatpush1.msra.mxu0 0.0
    %1087 = vmatprep.subr.mxu0 0.0
    %1088 = vmatpush1.msra.mxu0 0.0
    %1089 = vmatprep.subr.mxu0 0.0
    %1090 = vmatpush1.msra.mxu0 0.0
    %1091 = vmatprep.subr.mxu0 0.0
    %1092 = vmatpush1.msra.mxu0 0.0
    %1093 = vmatprep.subr.mxu0 0.0
    %1094 = vmatpush1.msra.mxu0 0.0
    %1095 = vmatprep.subr.mxu0 0.0
    %1096 = vmatpush1.msra.mxu0 0.0
    %1097 = vmatprep.subr.mxu0 0.0
    %1098 = vmatpush1.msra.mxu0 0.0
    %1099 = vmatprep.subr.mxu0 0.0
    %1100 = vmatpush1.msra.mxu0 0.0
    %1101 = vmatprep.mubr.f32.mxu0 0.0
    %1102 = vmatmul.mubr.f32.gmra.mrb[0].mxu0 %v1014
    %v1103 = vpop.f32.mrb[0].mxu0
    %v1104 = vadd.f32 %v976, %v1103
    %v1105 = vpop.f32.mrb[0].mxu0
    %v1106 = vadd.f32 %v976, %v1105
    %1107 = vmatprep.mubr.f32.mxu0 0.0
    %1108 = vmatmul.mubr.f32.gmra.mrb[0].mxu0 %v1017
    %v1109 = vpop.f32.mrb[0].mxu0
    %v1110 = vadd.f32 %v981, %v1109
    %v1111 = vpop.f32.mrb[0].mxu0
    %v1112 = vadd.f32 %v981, %v1111
    %1113 = vmatprep.mubr.f32.mxu0 0.0
    %1114 = vmatmul.mubr.f32.gmra.mrb[0].mxu0 %v1020
    %v1115 = vpop.f32.mrb[0].mxu0
    %v1116 = vadd.f32 %v986, %v1115
    %v1117 = vpop.f32.mrb[0].mxu0
    %v1118 = vadd.f32 %v986, %v1117
    %1119 = vmatprep.mubr.f32.mxu0 0.0
    %1120 = vmatmul.mubr.f32.gmra.mrb[0].mxu0 %v1023
    %v1121 = vpop.f32.mrb[0].mxu0
    %v1122 = vadd.f32 %v991, %v1121
    %v1123 = vpop.f32.mrb[0].mxu0
    %v1124 = vadd.f32 %v991, %v1123
    %1125 = vmatprep.mubr.f32.mxu0 0.0
    %1126 = vmatmul.mubr.f32.gmra.mrb[0].mxu0 %v1026
    %v1127 = vpop.f32.mrb[0].mxu0
    %v1128 = vadd.f32 %v996, %v1127
    %v1129 = vpop.f32.mrb[0].mxu0
    %v1130 = vadd.f32 %v996, %v1129
    %1131 = vmatprep.mubr.f32.mxu0 0.0
    %1132 = vmatmul.mubr.f32.gmra.mrb[0].mxu0 %v1029
    %v1133 = vpop.f32.mrb[0].mxu0
    %v1134 = vadd.f32 %v1001, %v1133
    %v1135 = vpop.f32.mrb[0].mxu0
    %v1136 = vadd.f32 %v1001, %v1135
    %1137 = vmatprep.mubr.f32.mxu0 0.0
    %1138 = vmatmul.mubr.f32.gmra.mrb[0].mxu0 %v1032
    %v1139 = vpop.f32.mrb[0].mxu0
    %v1140 = vadd.f32 %v1006, %v1139
    %v1141 = vpop.f32.mrb[0].mxu0
    %v1142 = vadd.f32 %v1006, %v1141
    %1143 = vmatprep.mubr.f32.mxu0 0.0
    %1144 = vmatmul.mubr.f32.gmra.mrb[0].mxu0 %v1035
    %v1145 = vpop.f32.mrb[0].mxu0
    %v1146 = vadd.f32 %v1011, %v1145
    %v1147 = vpop.f32.mrb[0].mxu0
    %v1148 = vadd.f32 %v1011, %v1147
    %1149 = vdwg.mxu0
    %v1150 = vmax.f32 %v1104, 0.0
    %v1151 = vmax.f32 %v1106, 0.0
    %v1152 = vmax.f32 %v1110, 0.0
    %v1153 = vmax.f32 %v1112, 0.0
    %v1154 = vmax.f32 %v1116, 0.0
    %v1155 = vmax.f32 %v1118, 0.0
    %v1156 = vmax.f32 %v1122, 0.0
    %v1157 = vmax.f32 %v1124, 0.0
    %v1158 = vmax.f32 %v1128, 0.0
    %v1159 = vmax.f32 %v1130, 0.0
    %v1160 = vmax.f32 %v1134, 0.0
    %v1161 = vmax.f32 %v1136, 0.0
    %v1162 = vmax.f32 %v1140, 0.0
    %v1163 = vmax.f32 %v1142, 0.0
    %v1164 = vmax.f32 %v1146, 0.0
    %v1165 = vmax.f32 %v1148, 0.0
    %v1166 = vld [vmem:[%s12] sm:$0xff]
    %v1167 = vld [vmem:[%s13] sm:$0xff]
    %1169 = vset.pattern.permute.xlu0 0
    %1170 = vperm.xlu0 %1169, %v1167
    %v1171 = vpop.permute.xlu0 %1170
    %v1174 = vsel %vm322, %v1166, 0
    %1176 = vmatprep.subr.mxu0 %v1151
    %1177 = vmatpush1.msra.mxu0 %v1150
    %1178 = vmatprep.subr.mxu0 %v1153
    %1179 = vmatpush1.msra.mxu0 %v1152
    %1180 = vmatprep.subr.mxu0 %v1155
    %1181 = vmatpush1.msra.mxu0 %v1154
    %1182 = vmatprep.subr.mxu0 %v1157
    %1183 = vmatpush1.msra.mxu0 %v1156
    %1184 = vmatprep.subr.mxu0 %v1159
    %1185 = vmatpush1.msra.mxu0 %v1158
    %1186 = vmatprep.subr.mxu0 %v1161
    %1187 = vmatpush1.msra.mxu0 %v1160
    %1188 = vmatprep.subr.mxu0 %v1163
    %1189 = vmatpush1.msra.mxu0 %v1162
    %1190 = vmatprep.subr.mxu0 %v1165
    %1191 = vmatpush1.msra.mxu0 %v1164
    %1192 = vmatprep.subr.mxu0 0.0
    %1193 = vmatpush1.msra.mxu0 0.0
    %1194 = vmatprep.subr.mxu0 0.0
    %1195 = vmatpush1.msra.mxu0 0.0
    %1196 = vmatprep.subr.mxu0 0.0
    %1197 = vmatpush1.msra.mxu0 0.0
    %1198 = vmatprep.subr.mxu0 0.0
    %1199 = vmatpush1.msra.mxu0 0.0
    %1200 = vmatprep.subr.mxu0 0.0
    %1201 = vmatpush1.msra.mxu0 0.0
    %1202 = vmatprep.subr.mxu0 0.0
    %1203 = vmatpush1.msra.mxu0 0.0
    %1204 = vmatprep.subr.mxu0 0.0
    %1205 = vmatpush1.msra.mxu0 0.0
    %1206 = vmatprep.subr.mxu0 0.0
    %1207 = vmatpush1.msra.mxu0 0.0
    %1208 = vmatprep.subr.mxu0 0.0
    %1209 = vmatpush1.msra.mxu0 0.0
    %1210 = vmatprep.subr.mxu0 0.0
    %1211 = vmatpush1.msra.mxu0 0.0
    %1212 = vmatprep.subr.mxu0 0.0
    %1213 = vmatpush1.msra.mxu0 0.0
    %1214 = vmatprep.subr.mxu0 0.0
    %1215 = vmatpush1.msra.mxu0 0.0
    %1216 = vmatprep.subr.mxu0 0.0
    %1217 = vmatpush1.msra.mxu0 0.0
    %1218 = vmatprep.subr.mxu0 0.0
    %1219 = vmatpush1.msra.mxu0 0.0
    %1220 = vmatprep.subr.mxu0 0.0
    %1221 = vmatpush1.msra.mxu0 0.0
    %1222 = vmatprep.subr.mxu0 0.0
    %1223 = vmatpush1.msra.mxu0 0.0
    %1224 = vmatprep.subr.mxu0 0.0
    %1225 = vmatpush1.msra.mxu0 0.0
    %1226 = vmatprep.subr.mxu0 0.0
    %1227 = vmatpush1.msra.mxu0 0.0
    %1228 = vmatprep.subr.mxu0 0.0
    %1229 = vmatpush1.msra.mxu0 0.0
    %1230 = vmatprep.subr.mxu0 0.0
    %1231 = vmatpush1.msra.mxu0 0.0
    %1232 = vmatprep.subr.mxu0 0.0
    %1233 = vmatpush1.msra.mxu0 0.0
    %1234 = vmatprep.subr.mxu0 0.0
    %1235 = vmatpush1.msra.mxu0 0.0
    %1236 = vmatprep.subr.mxu0 0.0
    %1237 = vmatpush1.msra.mxu0 0.0
    %1238 = vmatprep.subr.mxu0 0.0
    %1239 = vmatpush1.msra.mxu0 0.0
    %1240 = vmatprep.mubr.f32.mxu0 0.0
    %1241 = vmatmul.mubr.f32.gmra.mrb[0].mxu0 %v1174
    %v1242 = vpop.f32.mrb[0].mxu0
    %v1243 = vadd.f32 %v1171, %v1242
    %v1244 = vpop.f32.mrb[0].mxu0
    %v1245 = vadd.f32 %v1171, %v1244
    %1246 = vdwg.mxu0
    %v1247 = vtanh.pop %v1243
    %v1248 = vtanh.pop %v1245
    %1249 = vst [vmem:[#allocation2] sm:$0xff] %v1247
    %1250 = vst [vmem:[#allocation2 + $0x8] sm:$0xff] %v1248
    %1251 = vst [vmem:[#allocation2 + $0x10] sm:$0xff] %v563
    %1252 = vst [vmem:[#allocation2 + $0x18] sm:$0xff] %v565
    %1253 = vst [vmem:[#allocation2 + $0x20] sm:$0xff] %v578
    %1254 = vst [vmem:[#allocation2 + $0x28] sm:$0xff] %v580
    // Predicated region
    $region58: #{tpu_custom_call.1} parent=1 // pred_check
      _
    $region59: #{tpu_custom_call.1} parent=1 // pred_check_branch
      %1256 = sbr.rel (0) target = $region61
    $region60: #{tpu_custom_call.1} parent=1 // pred_region
      %s1258 = ssub.s32 768, 768
      %1259 = vsyncadd [#allocation3], %s1258
      %s1260 = sshll.u32 [#allocation2], 4
      %s1261 = int_to_ptr.vmem [resolvable:$true] %s1260
      %1266 = dma.vmem_to_hbm [thread:$0]  %s1261, 768, %s14, [#allocation3], 256, 256, 16
    $region61: #{tpu_custom_call.1} parent=1 // pred_fallthru
      _
    // Predicated region
    $region62: #{tpu_custom_call.1} parent=1 // pred_check
      _
    $region63: #{tpu_custom_call.1} parent=1 // pred_check_branch
      %1268 = sbr.rel (0) target = $region65
    $region64: #{tpu_custom_call.1} parent=1 // pred_region
      %1269 = dma.done [#allocation3], 768
    $region65: #{tpu_custom_call.1} parent=1 // pred_fallthru
      _
    %1270 = vsyncpa [#allocation3], 1

</llo_original>
